<compile_context>
chip_gen: v7x
topology: tpu7x:2x2x1
jax: 0.10.0
libtpu: 0.0.40
codegen_flags: <defaults>
</compile_context>

<pallas_src>
import jax
import jax.numpy as jnp
import numpy as np
from jax.experimental import pallas as pl
from jax.experimental.pallas import tpu as pltpu

BN_EPS = 1e-5
LANE = 128
# Explicit scoped-VMEM cap.  Safe on every generation (v5e/v6e: 128 MiB
# physical, v7x: only 64 MiB per TensorCore).  Raise toward ~100 MiB on
# v5e/v6e for bigger tiles; keep well under 64 MiB on v7x.
VMEM_LIMIT_BYTES = 32 * 1024 * 1024


def _round_up(x, m):
    return (x + m - 1) // m * m


def _pick_tile_h(H, W, Cin_p, pad, itemsize):
    """Largest divisor of H whose halo band stays small in VMEM (double-buffered)."""
    budget = 2 * 1024 * 1024
    for th in range(H, 0, -1):
        if H % th == 0 and (th + 2 * pad) * (W + 2 * pad) * Cin_p * itemsize <= budget:
            return th
    return 1


def _activation_and_rescale(feat, activation):
    """Activation + the module's Tanh-specific rescale, fused."""
    if activation == 'Tanh':
        # tanh, then `feat/2 + 0.5` followed by `0.999*feat`, folded into one
        # FMA: 0.999/2 = 0.4995.
        return jnp.tanh(feat) * 0.4995 + 0.4995
    if activation == 'ReLU':
        return jnp.maximum(feat, 0.0)
    if activation is None:
        return feat
    # TODO(synk): the PyTorch module instantiates arbitrary nn.* activations
    # via eval('nn.' + name); only Tanh / ReLU / None are wired up here.
    raise NotImplementedError(f"activation {activation!r} not supported")


def _make_conv_kernel(K, TH, W, Cin_p, Cout_p, compute_dtype,
                      use_bn, use_residual, activation):
    """Phase-1 kernel: K*K accumulated MXU dots over one (batch, row-band) tile.

    use_bn=True : emit the raw conv tile + per-batch sum / sum-of-squares
                  accumulators (two-phase BatchNorm).
    use_bn=False: fully fused conv + bias + residual + activation tile.
    """
    Mrows = TH * W

    def conv_tile(xb_ref, w_ref):
        acc = jnp.zeros((Mrows, Cout_p), jnp.float32)
        for dy in range(K):
            # Row (outer-dim) slice of the bf16 band is layout-trivial.  Upcast
            # to f32 before the unaligned column (sublane) slice so the
            # relayout stays on the cheap 32-bit path; cast back to bf16 only
            # for the MXU operands.  Accumulation is always f32.
            slab = xb_ref[0, dy:dy + TH].astype(jnp.float32)   # (TH, W+2p, Cin_p)
            for dx in range(K):
                win = slab[:, dx:dx + W, :].reshape(Mrows, Cin_p)
                acc = acc + jnp.dot(win.astype(compute_dtype),
                                    w_ref[dy * K + dx],
                                    preferred_element_type=jnp.float32)
        return acc

    if use_bn:
        def kernel(xb_ref, w_ref, conv_ref, s1_ref, s2_ref):
            acc = conv_tile(xb_ref, w_ref)
            # Conv bias intentionally NOT added: it is exactly cancelled by
            # the BN mean subtraction (saves a VPU add + one input stream).
            conv_ref[0] = acc.astype(conv_ref.dtype)

            # Per-batch-element accumulators; their block index ignores the
            # row-band axis, so they stay VMEM-resident across it.
            @pl.when(pl.program_id(1) == 0)
            def _init():
                s1_ref[...] = jnp.zeros_like(s1_ref)
                s2_ref[...] = jnp.zeros_like(s2_ref)

            s1_ref[0] += jnp.sum(acc, axis=0, keepdims=True)
            s2_ref[0] += jnp.sum(acc * acc, axis=0, keepdims=True)

        return kernel

    def kernel(*refs):
        if use_residual:
            xb_ref, w_ref, b_ref, x_ref, o_ref = refs
        else:
            xb_ref, w_ref, b_ref, o_ref = refs
        feat = conv_tile(xb_ref, w_ref) + b_ref[...]
        if use_residual:
            feat = feat + x_ref[0].astype(jnp.float32)
        feat = _activation_and_rescale(feat, activation)
        o_ref[0] = feat.astype(o_ref.dtype)

    return kernel


def _make_bn_apply_kernel(use_residual, activation):
    """Phase-2 kernel: folded BN scale/shift + residual + activation (+rescale)."""
    def kernel(*refs):
        if use_residual:
            conv_ref, scale_ref, shift_ref, x_ref, o_ref = refs
        else:
            conv_ref, scale_ref, shift_ref, o_ref = refs
        feat = conv_ref[0].astype(jnp.float32) * scale_ref[...] + shift_ref[...]
        if use_residual:
            feat = feat + x_ref[0].astype(jnp.float32)
        feat = _activation_and_rescale(feat, activation)
        o_ref[0] = feat.astype(o_ref.dtype)

    return kernel


def conv_block_apply(x_nchw, params, config, *, tile_h=None,
                     compute_dtype=jnp.bfloat16):
    """ConvBlock forward on one NCHW tensor (conv -> [BN] -> [+res] -> [act])."""
    N, Cin, H, W = x_nchw.shape
    p = config['parameters']
    Cout = p['out_channels']
    K = p['kernel_size']
    pad = p.get('padding', 0)
    stride = p.get('stride', 1)
    use_bn = config['use_bn']
    use_residual = config['use_residual']
    activation = config['use_activation']

    assert stride == 1, "kernel specialised to stride=1"
    # TODO(synk): non-'same' convolutions (2*pad != K-1) change the output
    # spatial size and are not handled by the row-band tiling below.
    assert 2 * pad == K - 1, "kernel specialised to 'same' convolutions"
    assert W % 8 == 0, "W must be a multiple of 8 (sublane tiling)"
    if use_residual:
        assert Cin == Cout, "residual add requires in_channels == out_channels"
    if activation not in (None, 'Tanh', 'ReLU'):
        # TODO(synk): other nn.* activations not wired up.
        raise NotImplementedError(f"activation {activation!r} not supported")

    # Lane-dense channel padding: full MXU tiles and unmasked vector stores.
    Cin_p = _round_up(Cin, LANE)
    Cout_p = _round_up(Cout, LANE)
    cdt = jnp.dtype(compute_dtype)
    isz = cdt.itemsize

    if tile_h is None:
        tile_h = _pick_tile_h(H, W, Cin_p, pad, isz)
    TH = tile_h
    assert H % TH == 0, "tile_h must divide H"
    nH = H // TH
    THp, Wp = TH + 2 * pad, W + 2 * pad
    Mrows = TH * W

    # --------------- plain-JAX layout glue (outside the kernels) ------------
    # TODO(synk): keeping the surrounding model NHWC would remove this
    # transpose (a full extra HBM read+write of the activations).
    # Cast to compute_dtype *before* padding / band stacking so the wrapper
    # glue and every intermediate stream is half-width in the bf16 path.
    x_nhwc = jnp.transpose(x_nchw, (0, 2, 3, 1)).astype(compute_dtype)
    xch = jnp.pad(x_nhwc, ((0, 0), (0, 0), (0, 0), (0, Cin_p - Cin)))
    xp = jnp.pad(xch, ((0, 0), (pad, pad), (pad, pad), (0, 0)))
    # Overlapping halo row-bands: only (TH+2p)/TH (~1.1-1.25x) of the input
    # bytes, vs the K*K (9x) blow-up of an im2col patches matrix.
    bands = jnp.stack([xp[:, h * TH: h * TH + THp] for h in range(nH)], axis=1)
    bands = bands.reshape(N * nH, THp, Wp, Cin_p)

    # conv weight (Cout, Cin, K, K) -> (K*K, Cin_p, Cout_p), tap-major.
    w = jnp.transpose(params['conv_w'], (2, 3, 1, 0)).reshape(K * K, Cin, Cout)
    w = jnp.pad(w, ((0, 0), (0, Cin_p - Cin), (0, Cout_p - Cout)))
    w = w.astype(compute_dtype)

    x_res = xch.reshape(N * nH, Mrows, Cin_p)      # residual, compute_dtype

    grid = (N, nH)
    band_spec = pl.BlockSpec((1, THp, Wp, Cin_p), lambda n, h: (n * nH + h, 0, 0, 0))
    w_spec = pl.BlockSpec((K * K, Cin_p, Cout_p), lambda n, h: (0, 0, 0))
    vec_spec = pl.BlockSpec((1, Cout_p), lambda n, h: (0, 0))
    stat_spec = pl.BlockSpec((1, 1, Cout_p), lambda n, h: (n, 0, 0))
    xres_spec = pl.BlockSpec((1, Mrows, Cin_p), lambda n, h: (n * nH + h, 0, 0))
    tile_spec = pl.BlockSpec((1, Mrows, Cout_p), lambda n, h: (n * nH + h, 0, 0))

    m_total = N * H * W
    conv_flops = 2 * m_total * K * K * Cin_p * Cout_p
    band_bytes = int(np.prod(bands.shape)) * isz
    w_bytes = int(np.prod(w.shape)) * isz
    out_dtype = x_nchw.dtype
    out_isz = jnp.dtype(out_dtype).itemsize

    if use_bn:
        # ---- phase 1: conv + per-batch sum / sum-of-squares accumulators ---
        kernel = _make_conv_kernel(K, TH, W, Cin_p, Cout_p, compute_dtype,
                                   use_bn=True, use_residual=False,
                                   activation=None)
        conv_out, s1, s2 = pl.pallas_call(
            kernel,
            grid=grid,
            in_specs=[band_spec, w_spec],
            out_specs=[tile_spec, stat_spec, stat_spec],
            out_shape=[
                # Intermediate in compute_dtype: halves phase1->phase2 HBM
                # traffic in the bf16 path; stats stay f32.
                jax.ShapeDtypeStruct((N * nH, Mrows, Cout_p), compute_dtype),
                jax.ShapeDtypeStruct((N, 1, Cout_p), jnp.float32),
                jax.ShapeDtypeStruct((N, 1, Cout_p), jnp.float32),
            ],
            compiler_params=pltpu.CompilerParams(
                # batch axis -> both TensorCores on v7x; the row-band axis
                # carries the stats accumulator so it must stay "arbitrary".
                dimension_semantics=("parallel", "arbitrary"),
                vmem_limit_bytes=VMEM_LIMIT_BYTES),
            cost_estimate=pl.CostEstimate(
                flops=conv_flops,
                transcendentals=0,
                bytes_accessed=band_bytes + w_bytes
                + m_total * Cout_p * isz + 2 * N * Cout_p * 4),
        )(bands, w)

        # ---- tiny finalize in plain JAX: fold BN into one scale/shift ------
        s1t = jnp.sum(s1, axis=(0, 1))
        s2t = jnp.sum(s2, axis=(0, 1))
        mean = s1t / m_total
        var = jnp.maximum(s2t / m_total - mean * mean, 0.0)   # biased, as BN
        inv = jax.lax.rsqrt(var + BN_EPS)
        gamma = jnp.pad(params['gamma'].astype(jnp.float32), (0, Cout_p - Cout))
        beta = jnp.pad(params['beta'].astype(jnp.float32), (0, Cout_p - Cout))
        scale = (gamma * inv).reshape(1, Cout_p)
        shift = (beta - mean * gamma * inv).reshape(1, Cout_p)

        # ---- phase 2: normalize + residual + activation, fully parallel ----
        apply_kernel = _make_bn_apply_kernel(use_residual, activation)
        ins = [conv_out, scale, shift] + ([x_res] if use_residual else [])
        in_specs = [tile_spec, vec_spec, vec_spec] + \
            ([xres_spec] if use_residual else [])
        out = pl.pallas_call(
            apply_kernel,
            grid=grid,
            in_specs=in_specs,
            out_specs=tile_spec,
            out_shape=jax.ShapeDtypeStruct((N * nH, Mrows, Cout_p), out_dtype),
            compiler_params=pltpu.CompilerParams(
                dimension_semantics=("parallel", "parallel"),
                vmem_limit_bytes=VMEM_LIMIT_BYTES),
            cost_estimate=pl.CostEstimate(
                flops=6 * m_total * Cout_p,
                transcendentals=m_total * Cout_p if activation == 'Tanh' else 0,
                bytes_accessed=m_total * Cout_p * (isz + out_isz)
                + (m_total * Cin_p * isz if use_residual else 0)),
        )(*ins)
    else:
        # ---- single fused kernel: conv + bias + residual + activation ------
        if p.get('bias', True):
            bias = params['conv_b'].astype(jnp.float32)
        else:
            bias = jnp.zeros((Cout,), jnp.float32)
        bias = jnp.pad(bias, (0, Cout_p - Cout)).reshape(1, Cout_p)

        kernel = _make_conv_kernel(K, TH, W, Cin_p, Cout_p, compute_dtype,
                                   use_bn=False, use_residual=use_residual,
                                   activation=activation)
        ins = [bands, w, bias] + ([x_res] if use_residual else [])
        in_specs = [band_spec, w_spec, vec_spec] + \
            ([xres_spec] if use_residual else [])
        out = pl.pallas_call(
            kernel,
            grid=grid,
            in_specs=in_specs,
            out_specs=tile_spec,
            out_shape=jax.ShapeDtypeStruct((N * nH, Mrows, Cout_p), out_dtype),
            compiler_params=pltpu.CompilerParams(
                dimension_semantics=("parallel", "parallel"),
                vmem_limit_bytes=VMEM_LIMIT_BYTES),
            cost_estimate=pl.CostEstimate(
                flops=conv_flops,
                transcendentals=m_total * Cout_p if activation == 'Tanh' else 0,
                bytes_accessed=band_bytes + w_bytes + m_total * Cout_p * out_isz
                + (m_total * Cin_p * isz if use_residual else 0)),
        )(*ins)

    out_nhwc = out.reshape(N, H, W, Cout_p)[:, :, :, :Cout]
    return jnp.transpose(out_nhwc, (0, 3, 1, 2))            # back to NCHW


def conv_block_forward(layer_name, config, feats, params, **kwargs):
    """Mirror of ConvBlock.forward: read last entry of `feats`, write result."""
    x = feats[[k for k in feats][-1]]
    feat = conv_block_apply(x, params, config, **kwargs)
    feats.update({layer_name: feat})
    return feats


def reference(x_nchw, params, config):
    """Pure-JAX (lax conv, f32) reference matching the PyTorch forward."""
    p = config['parameters']
    pad = p.get('padding', 0)
    y = jax.lax.conv_general_dilated(
        x_nchw, params['conv_w'], (p.get('stride', 1),) * 2,
        [(pad, pad), (pad, pad)],
        dimension_numbers=('NCHW', 'OIHW', 'NCHW'))
    if p.get('bias', True):
        y = y + params['conv_b'][None, :, None, None]
    if config['use_bn']:
        mean = jnp.mean(y, axis=(0, 2, 3), keepdims=True)
        var = jnp.mean((y - mean) ** 2, axis=(0, 2, 3), keepdims=True)
        y = (y - mean) * jax.lax.rsqrt(var + BN_EPS)
        y = y * params['gamma'][None, :, None, None] + params['beta'][None, :, None, None]
    act = config['use_activation']
    if act is not None:
        z = y + x_nchw if config['use_residual'] else y
        if act == 'Tanh':
            y = jnp.tanh(z)
        elif act == 'ReLU':
            y = jnp.maximum(z, 0.0)
    elif config['use_residual']:
        y = y + x_nchw
    if act == 'Tanh':
        y = 0.999 * (y / 2.0 + 0.5)
    return y


if __name__ == "__main__":
    N, C, H, W = 2, 4, 16, 16
    base_params = {'in_channels': C, 'out_channels': C, 'kernel_size': 3,
                   'stride': 1, 'padding': 1, 'bias': True}
    cfg_bn_tanh = {
        'reuse_times': 1,          # stored by the module, unused in forward
        'use_residual': True,
        'use_bn': True,
        'use_activation': 'Tanh',
        'parameters': dict(base_params),
    }
    cfg_relu = {
        'reuse_times': 1,
        'use_residual': True,
        'use_bn': False,
        'use_activation': 'ReLU',
        'parameters': dict(base_params),
    }

    key = jax.random.PRNGKey(0)
    k1, k2, k3, k4, k5 = jax.random.split(key, 5)
    x = jax.random.normal(k1, (N, C, H, W), jnp.float32)
    params = {
        'conv_w': 0.1 * jax.random.normal(k2, (C, C, 3, 3), jnp.float32),
        'conv_b': 0.05 * jax.random.normal(k3, (C,), jnp.float32),
        'gamma': 1.0 + 0.1 * jax.random.normal(k4, (C,), jnp.float32),
        'beta': 0.05 * jax.random.normal(k5, (C,), jnp.float32),
    }

    # tile_h=8 -> grid (N, 2): exercises the multi-tile two-phase BN path.
    feats = {'input': x}
    feats = conv_block_forward('conv1', cfg_bn_tanh, feats, params, tile_h=8)
    out = feats['conv1']
    jax.block_until_ready(out)
    assert out.shape == (N, C, H, W)

    ref = reference(x, params, cfg_bn_tanh)
    # bf16 MXU operands + bf16 intermediates (f32 accumulation/statistics)
    # vs a pure-f32 reference.
    np.testing.assert_allclose(np.asarray(out), np.asarray(ref),
                               atol=3e-2, rtol=3e-2)

    # Same config with f32 operands/intermediates: tight check of the kernel
    # math (conv taps, two-phase BN statistics, residual, fused Tanh rescale).
    out_f32 = conv_block_apply(x, params, cfg_bn_tanh, tile_h=8,
                               compute_dtype=jnp.float32)
    np.testing.assert_allclose(np.asarray(out_f32), np.asarray(ref),
                               atol=1e-3, rtol=1e-3)

    # No-BN fused path (conv + bias + residual + ReLU in one kernel).
    out2 = conv_block_apply(x, params, cfg_relu, tile_h=8)
    ref2 = reference(x, params, cfg_relu)
    np.testing.assert_allclose(np.asarray(out2), np.asarray(ref2),
                               atol=3e-2, rtol=3e-2)

    # Default tile_h picker (single band per image) + f32 path.
    out3 = conv_block_apply(x, params, cfg_relu, compute_dtype=jnp.float32)
    np.testing.assert_allclose(np.asarray(out3), np.asarray(ref2),
                               atol=1e-3, rtol=1e-3)

    print("KERNEL_OK")
</pallas_src>

<mosaic_0001>
module attributes {stable_mosaic.version = 11 : i64} {
  func.func @kernel(%arg0: i32, %arg1: i32, %arg2: memref<1x10x18x128xbf16, #tpu.memory_space<vmem>>, %arg3: memref<9x128x128xbf16, #tpu.memory_space<vmem>>, %arg4: memref<1x128x128xbf16, #tpu.memory_space<vmem>>, %arg5: memref<1x1x128xf32, #tpu.memory_space<vmem>>, %arg6: memref<1x1x128xf32, #tpu.memory_space<vmem>>) attributes {dimension_semantics = [#tpu.dimension_semantics<parallel>, #tpu.dimension_semantics<arbitrary>], iteration_bounds = array<i64: 2, 2>, scalar_prefetch = 0 : i64, scratch_operands = 0 : i64, tpu.core_type = #tpu.core_type<tc>, window_params = [{transform_indices = @transform_0, window_bounds = array<i64: 1, 10, 18, 128>}, {pipeline_mode = #tpu.pipeline_mode<synchronous>, transform_indices = @transform_1, window_bounds = array<i64: 9, 128, 128>}, {transform_indices = @transform_2, window_bounds = array<i64: 1, 128, 128>}, {transform_indices = @transform_3, window_bounds = array<i64: 1, 1, 128>}, {transform_indices = @transform_4, window_bounds = array<i64: 1, 1, 128>}]} {
    %cst = arith.constant 0.000000e+00 : f32
    %0 = vector.broadcast %cst : f32 to vector<128x128xf32>
    %c0 = arith.constant 0 : index
    %c0_0 = arith.constant 0 : index
    %c0_1 = arith.constant 0 : index
    %c0_2 = arith.constant 0 : index
    %1 = vector.load %arg2[%c0, %c0_0, %c0_1, %c0_2] : memref<1x10x18x128xbf16, #tpu.memory_space<vmem>>, vector<1x8x18x128xbf16>
    %2 = vector.shape_cast %1 : vector<1x8x18x128xbf16> to vector<8x18x128xbf16>
    %3 = arith.extf %2 : vector<8x18x128xbf16> to vector<8x18x128xf32>
    %4 = vector.extract_strided_slice %3 {offsets = [0, 0, 0], sizes = [8, 16, 128], strides = [1, 1, 1]} : vector<8x18x128xf32> to vector<8x16x128xf32>
    %5 = vector.shape_cast %4 : vector<8x16x128xf32> to vector<128x128xf32>
    %6 = arith.truncf %5 : vector<128x128xf32> to vector<128x128xbf16>
    %c0_3 = arith.constant 0 : index
    %c0_4 = arith.constant 0 : index
    %c0_5 = arith.constant 0 : index
    %7 = vector.load %arg3[%c0_3, %c0_4, %c0_5] : memref<9x128x128xbf16, #tpu.memory_space<vmem>>, vector<1x128x128xbf16>
    %8 = vector.shape_cast %7 : vector<1x128x128xbf16> to vector<128x128xbf16>
    %cst_6 = arith.constant dense<0.000000e+00> : vector<128x128xf32>
    %9 = tpu.matmul %6, %8, %cst_6 {dimension_numbers = #tpu.dot_dimension_numbers<[1], [0], [0], [1], [0, 0, 1, 1], [], []>} : vector<128x128xbf16>, vector<128x128xbf16>, vector<128x128xf32> -> vector<128x128xf32>
    %10 = arith.addf %0, %9 : vector<128x128xf32>
    %11 = vector.extract_strided_slice %3 {offsets = [0, 1, 0], sizes = [8, 16, 128], strides = [1, 1, 1]} : vector<8x18x128xf32> to vector<8x16x128xf32>
    %12 = vector.shape_cast %11 : vector<8x16x128xf32> to vector<128x128xf32>
    %13 = arith.truncf %12 : vector<128x128xf32> to vector<128x128xbf16>
    %c1 = arith.constant 1 : index
    %c0_7 = arith.constant 0 : index
    %c0_8 = arith.constant 0 : index
    %14 = vector.load %arg3[%c1, %c0_7, %c0_8] : memref<9x128x128xbf16, #tpu.memory_space<vmem>>, vector<1x128x128xbf16>
    %15 = vector.shape_cast %14 : vector<1x128x128xbf16> to vector<128x128xbf16>
    %cst_9 = arith.constant dense<0.000000e+00> : vector<128x128xf32>
    %16 = tpu.matmul %13, %15, %cst_9 {dimension_numbers = #tpu.dot_dimension_numbers<[1], [0], [0], [1], [0, 0, 1, 1], [], []>} : vector<128x128xbf16>, vector<128x128xbf16>, vector<128x128xf32> -> vector<128x128xf32>
    %17 = arith.addf %10, %16 : vector<128x128xf32>
    %18 = vector.extract_strided_slice %3 {offsets = [0, 2, 0], sizes = [8, 16, 128], strides = [1, 1, 1]} : vector<8x18x128xf32> to vector<8x16x128xf32>
    %19 = vector.shape_cast %18 : vector<8x16x128xf32> to vector<128x128xf32>
    %20 = arith.truncf %19 : vector<128x128xf32> to vector<128x128xbf16>
    %c2 = arith.constant 2 : index
    %c0_10 = arith.constant 0 : index
    %c0_11 = arith.constant 0 : index
    %21 = vector.load %arg3[%c2, %c0_10, %c0_11] : memref<9x128x128xbf16, #tpu.memory_space<vmem>>, vector<1x128x128xbf16>
    %22 = vector.shape_cast %21 : vector<1x128x128xbf16> to vector<128x128xbf16>
    %cst_12 = arith.constant dense<0.000000e+00> : vector<128x128xf32>
    %23 = tpu.matmul %20, %22, %cst_12 {dimension_numbers = #tpu.dot_dimension_numbers<[1], [0], [0], [1], [0, 0, 1, 1], [], []>} : vector<128x128xbf16>, vector<128x128xbf16>, vector<128x128xf32> -> vector<128x128xf32>
    %24 = arith.addf %17, %23 : vector<128x128xf32>
    %c0_13 = arith.constant 0 : index
    %c1_14 = arith.constant 1 : index
    %c0_15 = arith.constant 0 : index
    %c0_16 = arith.constant 0 : index
    %25 = vector.load %arg2[%c0_13, %c1_14, %c0_15, %c0_16] : memref<1x10x18x128xbf16, #tpu.memory_space<vmem>>, vector<1x8x18x128xbf16>
    %26 = vector.shape_cast %25 : vector<1x8x18x128xbf16> to vector<8x18x128xbf16>
    %27 = arith.extf %26 : vector<8x18x128xbf16> to vector<8x18x128xf32>
    %28 = vector.extract_strided_slice %27 {offsets = [0, 0, 0], sizes = [8, 16, 128], strides = [1, 1, 1]} : vector<8x18x128xf32> to vector<8x16x128xf32>
    %29 = vector.shape_cast %28 : vector<8x16x128xf32> to vector<128x128xf32>
    %30 = arith.truncf %29 : vector<128x128xf32> to vector<128x128xbf16>
    %c3 = arith.constant 3 : index
    %c0_17 = arith.constant 0 : index
    %c0_18 = arith.constant 0 : index
    %31 = vector.load %arg3[%c3, %c0_17, %c0_18] : memref<9x128x128xbf16, #tpu.memory_space<vmem>>, vector<1x128x128xbf16>
    %32 = vector.shape_cast %31 : vector<1x128x128xbf16> to vector<128x128xbf16>
    %cst_19 = arith.constant dense<0.000000e+00> : vector<128x128xf32>
    %33 = tpu.matmul %30, %32, %cst_19 {dimension_numbers = #tpu.dot_dimension_numbers<[1], [0], [0], [1], [0, 0, 1, 1], [], []>} : vector<128x128xbf16>, vector<128x128xbf16>, vector<128x128xf32> -> vector<128x128xf32>
    %34 = arith.addf %24, %33 : vector<128x128xf32>
    %35 = vector.extract_strided_slice %27 {offsets = [0, 1, 0], sizes = [8, 16, 128], strides = [1, 1, 1]} : vector<8x18x128xf32> to vector<8x16x128xf32>
    %36 = vector.shape_cast %35 : vector<8x16x128xf32> to vector<128x128xf32>
    %37 = arith.truncf %36 : vector<128x128xf32> to vector<128x128xbf16>
    %c4 = arith.constant 4 : index
    %c0_20 = arith.constant 0 : index
    %c0_21 = arith.constant 0 : index
    %38 = vector.load %arg3[%c4, %c0_20, %c0_21] : memref<9x128x128xbf16, #tpu.memory_space<vmem>>, vector<1x128x128xbf16>
    %39 = vector.shape_cast %38 : vector<1x128x128xbf16> to vector<128x128xbf16>
    %cst_22 = arith.constant dense<0.000000e+00> : vector<128x128xf32>
    %40 = tpu.matmul %37, %39, %cst_22 {dimension_numbers = #tpu.dot_dimension_numbers<[1], [0], [0], [1], [0, 0, 1, 1], [], []>} : vector<128x128xbf16>, vector<128x128xbf16>, vector<128x128xf32> -> vector<128x128xf32>
    %41 = arith.addf %34, %40 : vector<128x128xf32>
    %42 = vector.extract_strided_slice %27 {offsets = [0, 2, 0], sizes = [8, 16, 128], strides = [1, 1, 1]} : vector<8x18x128xf32> to vector<8x16x128xf32>
    %43 = vector.shape_cast %42 : vector<8x16x128xf32> to vector<128x128xf32>
    %44 = arith.truncf %43 : vector<128x128xf32> to vector<128x128xbf16>
    %c5 = arith.constant 5 : index
    %c0_23 = arith.constant 0 : index
    %c0_24 = arith.constant 0 : index
    %45 = vector.load %arg3[%c5, %c0_23, %c0_24] : memref<9x128x128xbf16, #tpu.memory_space<vmem>>, vector<1x128x128xbf16>
    %46 = vector.shape_cast %45 : vector<1x128x128xbf16> to vector<128x128xbf16>
    %cst_25 = arith.constant dense<0.000000e+00> : vector<128x128xf32>
    %47 = tpu.matmul %44, %46, %cst_25 {dimension_numbers = #tpu.dot_dimension_numbers<[1], [0], [0], [1], [0, 0, 1, 1], [], []>} : vector<128x128xbf16>, vector<128x128xbf16>, vector<128x128xf32> -> vector<128x128xf32>
    %48 = arith.addf %41, %47 : vector<128x128xf32>
    %c0_26 = arith.constant 0 : index
    %c2_27 = arith.constant 2 : index
    %c0_28 = arith.constant 0 : index
    %c0_29 = arith.constant 0 : index
    %49 = vector.load %arg2[%c0_26, %c2_27, %c0_28, %c0_29] : memref<1x10x18x128xbf16, #tpu.memory_space<vmem>>, vector<1x8x18x128xbf16>
    %50 = vector.shape_cast %49 : vector<1x8x18x128xbf16> to vector<8x18x128xbf16>
    %51 = arith.extf %50 : vector<8x18x128xbf16> to vector<8x18x128xf32>
    %52 = vector.extract_strided_slice %51 {offsets = [0, 0, 0], sizes = [8, 16, 128], strides = [1, 1, 1]} : vector<8x18x128xf32> to vector<8x16x128xf32>
    %53 = vector.shape_cast %52 : vector<8x16x128xf32> to vector<128x128xf32>
    %54 = arith.truncf %53 : vector<128x128xf32> to vector<128x128xbf16>
    %c6 = arith.constant 6 : index
    %c0_30 = arith.constant 0 : index
    %c0_31 = arith.constant 0 : index
    %55 = vector.load %arg3[%c6, %c0_30, %c0_31] : memref<9x128x128xbf16, #tpu.memory_space<vmem>>, vector<1x128x128xbf16>
    %56 = vector.shape_cast %55 : vector<1x128x128xbf16> to vector<128x128xbf16>
    %cst_32 = arith.constant dense<0.000000e+00> : vector<128x128xf32>
    %57 = tpu.matmul %54, %56, %cst_32 {dimension_numbers = #tpu.dot_dimension_numbers<[1], [0], [0], [1], [0, 0, 1, 1], [], []>} : vector<128x128xbf16>, vector<128x128xbf16>, vector<128x128xf32> -> vector<128x128xf32>
    %58 = arith.addf %48, %57 : vector<128x128xf32>
    %59 = vector.extract_strided_slice %51 {offsets = [0, 1, 0], sizes = [8, 16, 128], strides = [1, 1, 1]} : vector<8x18x128xf32> to vector<8x16x128xf32>
    %60 = vector.shape_cast %59 : vector<8x16x128xf32> to vector<128x128xf32>
    %61 = arith.truncf %60 : vector<128x128xf32> to vector<128x128xbf16>
    %c7 = arith.constant 7 : index
    %c0_33 = arith.constant 0 : index
    %c0_34 = arith.constant 0 : index
    %62 = vector.load %arg3[%c7, %c0_33, %c0_34] : memref<9x128x128xbf16, #tpu.memory_space<vmem>>, vector<1x128x128xbf16>
    %63 = vector.shape_cast %62 : vector<1x128x128xbf16> to vector<128x128xbf16>
    %cst_35 = arith.constant dense<0.000000e+00> : vector<128x128xf32>
    %64 = tpu.matmul %61, %63, %cst_35 {dimension_numbers = #tpu.dot_dimension_numbers<[1], [0], [0], [1], [0, 0, 1, 1], [], []>} : vector<128x128xbf16>, vector<128x128xbf16>, vector<128x128xf32> -> vector<128x128xf32>
    %65 = arith.addf %58, %64 : vector<128x128xf32>
    %66 = vector.extract_strided_slice %51 {offsets = [0, 2, 0], sizes = [8, 16, 128], strides = [1, 1, 1]} : vector<8x18x128xf32> to vector<8x16x128xf32>
    %67 = vector.shape_cast %66 : vector<8x16x128xf32> to vector<128x128xf32>
    %68 = arith.truncf %67 : vector<128x128xf32> to vector<128x128xbf16>
    %c8 = arith.constant 8 : index
    %c0_36 = arith.constant 0 : index
    %c0_37 = arith.constant 0 : index
    %69 = vector.load %arg3[%c8, %c0_36, %c0_37] : memref<9x128x128xbf16, #tpu.memory_space<vmem>>, vector<1x128x128xbf16>
    %70 = vector.shape_cast %69 : vector<1x128x128xbf16> to vector<128x128xbf16>
    %cst_38 = arith.constant dense<0.000000e+00> : vector<128x128xf32>
    %71 = tpu.matmul %68, %70, %cst_38 {dimension_numbers = #tpu.dot_dimension_numbers<[1], [0], [0], [1], [0, 0, 1, 1], [], []>} : vector<128x128xbf16>, vector<128x128xbf16>, vector<128x128xf32> -> vector<128x128xf32>
    %72 = arith.addf %65, %71 : vector<128x128xf32>
    %73 = arith.truncf %72 : vector<128x128xf32> to vector<128x128xbf16>
    %c0_39 = arith.constant 0 : index
    %c0_40 = arith.constant 0 : index
    %c0_41 = arith.constant 0 : index
    %74 = vector.load %arg4[%c0_39, %c0_40, %c0_41] : memref<1x128x128xbf16, #tpu.memory_space<vmem>>, vector<1x128x128xbf16>
    %75 = vector.shape_cast %74 : vector<1x128x128xbf16> to vector<128x128xbf16>
    %76 = vector.shape_cast %73 : vector<128x128xbf16> to vector<1x128x128xbf16>
    tpu.vector_store %arg4[%c0_39, %c0_40, %c0_41], %76 {strides = array<i32>} : memref<1x128x128xbf16, #tpu.memory_space<vmem>>, vector<1x128x128xbf16>,
    %c0_i32 = arith.constant 0 : i32
    %77 = arith.cmpi eq, %arg1, %c0_i32 : i32
    %78 = arith.extui %77 : i1 to i32
    %c0_i32_42 = arith.constant 0 : i32
    %79 = arith.cmpi ne, %78, %c0_i32_42 : i32
    scf.if %79 {
      %cst_57 = arith.constant 0.000000e+00 : f32
      %97 = vector.broadcast %cst_57 : f32 to vector<1x1x128xf32>
      %c0_58 = arith.constant 0 : index
      %c0_59 = arith.constant 0 : index
      %c0_60 = arith.constant 0 : index
      %98 = vector.load %arg5[%c0_58, %c0_59, %c0_60] : memref<1x1x128xf32, #tpu.memory_space<vmem>>, vector<1x1x128xf32>
      tpu.vector_store %arg5[%c0_58, %c0_59, %c0_60], %97 {strides = array<i32>} : memref<1x1x128xf32, #tpu.memory_space<vmem>>, vector<1x1x128xf32>,
      %cst_61 = arith.constant 0.000000e+00 : f32
      %99 = vector.broadcast %cst_61 : f32 to vector<1x1x128xf32>
      %c0_62 = arith.constant 0 : index
      %c0_63 = arith.constant 0 : index
      %c0_64 = arith.constant 0 : index
      %100 = vector.load %arg6[%c0_62, %c0_63, %c0_64] : memref<1x1x128xf32, #tpu.memory_space<vmem>>, vector<1x1x128xf32>
      tpu.vector_store %arg6[%c0_62, %c0_63, %c0_64], %99 {strides = array<i32>} : memref<1x1x128xf32, #tpu.memory_space<vmem>>, vector<1x1x128xf32>,
    } else {
    }
    %c0_43 = arith.constant 0 : index
    %c0_44 = arith.constant 0 : index
    %c0_45 = arith.constant 0 : index
    %80 = vector.load %arg5[%c0_43, %c0_44, %c0_45] : memref<1x1x128xf32, #tpu.memory_space<vmem>>, vector<1x1x128xf32>
    %81 = vector.shape_cast %80 : vector<1x1x128xf32> to vector<1x128xf32>
    %cst_46 = arith.constant dense<0.000000e+00> : vector<128xf32>
    %82 = vector.multi_reduction <add>, %72, %cst_46 [0] : vector<128x128xf32> to vector<128xf32>
    %83 = vector.shape_cast %82 : vector<128xf32> to vector<1x128xf32>
    %84 = arith.addf %81, %83 : vector<1x128xf32>
    %c0_47 = arith.constant 0 : index
    %c0_48 = arith.constant 0 : index
    %c0_49 = arith.constant 0 : index
    %85 = vector.load %arg5[%c0_47, %c0_48, %c0_49] : memref<1x1x128xf32, #tpu.memory_space<vmem>>, vector<1x1x128xf32>
    %86 = vector.shape_cast %85 : vector<1x1x128xf32> to vector<1x128xf32>
    %87 = vector.shape_cast %84 : vector<1x128xf32> to vector<1x1x128xf32>
    tpu.vector_store %arg5[%c0_47, %c0_48, %c0_49], %87 {strides = array<i32>} : memref<1x1x128xf32, #tpu.memory_space<vmem>>, vector<1x1x128xf32>,
    %c0_50 = arith.constant 0 : index
    %c0_51 = arith.constant 0 : index
    %c0_52 = arith.constant 0 : index
    %88 = vector.load %arg6[%c0_50, %c0_51, %c0_52] : memref<1x1x128xf32, #tpu.memory_space<vmem>>, vector<1x1x128xf32>
    %89 = vector.shape_cast %88 : vector<1x1x128xf32> to vector<1x128xf32>
    %90 = arith.mulf %72, %72 : vector<128x128xf32>
    %cst_53 = arith.constant dense<0.000000e+00> : vector<128xf32>
    %91 = vector.multi_reduction <add>, %90, %cst_53 [0] : vector<128x128xf32> to vector<128xf32>
    %92 = vector.shape_cast %91 : vector<128xf32> to vector<1x128xf32>
    %93 = arith.addf %89, %92 : vector<1x128xf32>
    %c0_54 = arith.constant 0 : index
    %c0_55 = arith.constant 0 : index
    %c0_56 = arith.constant 0 : index
    %94 = vector.load %arg6[%c0_54, %c0_55, %c0_56] : memref<1x1x128xf32, #tpu.memory_space<vmem>>, vector<1x1x128xf32>
    %95 = vector.shape_cast %94 : vector<1x1x128xf32> to vector<1x128xf32>
    %96 = vector.shape_cast %93 : vector<1x128xf32> to vector<1x1x128xf32>
    tpu.vector_store %arg6[%c0_54, %c0_55, %c0_56], %96 {strides = array<i32>} : memref<1x1x128xf32, #tpu.memory_space<vmem>>, vector<1x1x128xf32>,
    return
  }
  func.func @transform_0(%arg0: i32, %arg1: i32) -> (i32, i32, i32, i32) {
    %c2_i32 = arith.constant 2 : i32
    %0 = arith.muli %arg0, %c2_i32 : i32
    %1 = arith.addi %0, %arg1 : i32
    %c0_i32 = arith.constant 0 : i32
    %c0_i32_0 = arith.constant 0 : i32
    %c0_i32_1 = arith.constant 0 : i32
    %c0_i32_2 = arith.constant 0 : i32
    return %1, %c0_i32, %c0_i32_0, %c0_i32_1 : i32, i32, i32, i32
  }
  func.func @transform_1(%arg0: i32, %arg1: i32) -> (i32, i32, i32) {
    %c0_i32 = arith.constant 0 : i32
    %c0_i32_0 = arith.constant 0 : i32
    %c0_i32_1 = arith.constant 0 : i32
    %c0_i32_2 = arith.constant 0 : i32
    return %c0_i32, %c0_i32_0, %c0_i32_1 : i32, i32, i32
  }
  func.func @transform_2(%arg0: i32, %arg1: i32) -> (i32, i32, i32) {
    %c2_i32 = arith.constant 2 : i32
    %0 = arith.muli %arg0, %c2_i32 : i32
    %1 = arith.addi %0, %arg1 : i32
    %c0_i32 = arith.constant 0 : i32
    %c0_i32_0 = arith.constant 0 : i32
    %c0_i32_1 = arith.constant 0 : i32
    return %1, %c0_i32, %c0_i32_0 : i32, i32, i32
  }
  func.func @transform_3(%arg0: i32, %arg1: i32) -> (i32, i32, i32) {
    %c0_i32 = arith.constant 0 : i32
    %c0_i32_0 = arith.constant 0 : i32
    %c0_i32_1 = arith.constant 0 : i32
    return %arg0, %c0_i32, %c0_i32_0 : i32, i32, i32
  }
  func.func @transform_4(%arg0: i32, %arg1: i32) -> (i32, i32, i32) {
    %c0_i32 = arith.constant 0 : i32
    %c0_i32_0 = arith.constant 0 : i32
    %c0_i32_1 = arith.constant 0 : i32
    return %arg0, %c0_i32, %c0_i32_0 : i32, i32, i32
  }
}

</mosaic_0001>

<llo_original>
// kernel: tpu_custom_call.1
$region0: #{tpu_custom_call.1}
  #allocation0 [shape = 'u32[]', space=smem, size = 0x4, offset = 0x4, fixed_abs, tag = 'smem constant byte address 0x4 - core index']
  #allocation1 [shape = 'u32[144,128]{1,0:T(1,128)}', space=vmem, size = 0x12000, scoped, tag = 'internal scratch']
  %s0 = inlined_call_operand.vmem [shape: bf16[4,10,18,128], index: 0, kind: input, shape index: {}]
  %s1 = inlined_call_operand.vmem [shape: bf16[9,128,128], index: 1, kind: input, shape index: {}]
  %s2 = inlined_call_operand.hbm [shape: bf16[4,128,128], index: 2, kind: output, shape index: {0}]
  %s3 = inlined_call_operand.hbm [shape: f32[2,1,128], index: 3, kind: output, shape index: {1}]
  %s4 = inlined_call_operand.hbm [shape: f32[2,1,128], index: 4, kind: output, shape index: {2}]
  %5 = xla_tuple %s2, %s3, %s4
  %s6 = sld [smem:[#allocation0]]
  $region61: #{tpu_custom_call.1} parent=0
    _
  %s8 = ssub.s32 1, %s6
  %s9 = scalar_select 0, %s8, %s6
  $region1: #{tpu_custom_call.1} parent=0
    #allocation2 [shape = 'u8[65536]{0}', space=vmem, size = 0x10000, scoped, tag = 'output window, operand 0']
    #allocation3 [shape = 's32[2]{0}', space=sflag, size = 0x8, scoped, tag = 'scoped memory for tpu_custom_call.1']
    #allocation4 [shape = 'u8[1024]{0}', space=vmem, size = 0x400, scoped, tag = 'output window, operand 1']
    #allocation5 [shape = 's32[2]{0}', space=sflag, size = 0x8, scoped, tag = 'scoped memory for tpu_custom_call.1']
    #allocation6 [shape = 'u8[1024]{0}', space=vmem, size = 0x400, scoped, tag = 'output window, operand 2']
    %10 = vsyncpa [#allocation3], 0
    %s11 = scalar_lea.sflag [#allocation3], 1
    %12 = vsyncpa %s11, 0
    %13 = vsyncpa [#allocation5], 0
    %s14 = scalar_lea.sflag [#allocation5], 1
    %15 = vsyncpa %s14, 0
    loop: start=0, step=1, limit=6
    $region2: #{tpu_custom_call.1} parent=1 // loop_pre_header
      _
    $region3: #{tpu_custom_call.1} parent=1 // loop_header
      %s17 = sphi 0, %s21
      %p18 = scmp.ge.s32.totalorder %s17, 6
      %s24 = sphi 0, %s36
      %s25 = sphi 0, %s32
      %s26 = sphi 0, %s24
      %s27 = sphi 0, %s25
      %s28 = sphi 0, %s26
      %s29 = sphi 0, %s27
      %s43 = sphi 0, %s45
      %s46 = sphi 0, %s43
      %s47 = sphi 0, %s46
      %s63 = sphi 0, %s47
      %s67 = sphi 0, %s67
      %s69 = sphi 0, %s67
      %s70 = sphi 0, %s69
      %s84 = sphi 0, %s70
      %s94 = sphi 0, %s96
      %s97 = sphi 0, %s94
      %s98 = sphi 0, %s97
      %s114 = sphi 0, %s98
      %s120 = sphi 0, %s122
      %s123 = sphi 0, %s120
      %s124 = sphi 0, %s123
      %s140 = sphi 0, %s124
      %s146 = sphi 0, %s148
      %s149 = sphi 0, %s146
      %s150 = sphi 0, %s149
      %s166 = sphi 0, %s150
    $region4: #{tpu_custom_call.1} parent=1 // loop_header_branch
      %20 = sbr.rel (%p18) target = $region8
    $region5: #{tpu_custom_call.1} parent=1 // loop_body
      %s22 = ssub.s32 %s17, 1
      %s23 = ssub.s32 %s17, 2
      %s30 = sadd.s32 1, %s25
      %p31 = scmp.ge.s32.totalorder %s30, 2
      %s32 = scalar_select %p31, 0, %s30
      %s33 = sadd.s32 1, %s24
      %s34 = scalar_select %p31, %s33, %s24
      %p35 = scmp.ge.s32.totalorder %s34, 2
      %s36 = scalar_select %p35, 0, %s34
      %s37 = smul.u32 %s24, 2
      %s38 = sadd.s32 %s37, %s25
      %s39 = smul.u32 %s36, 2
      %s40 = sadd.s32 %s39, %s32
      %s41 = ssub.s32 %s38, %s40
      %p42 = scmp.eq.s32.totalorder %s41, 0
      %s44 = sadd.s32 %s43, 1
      %s45 = scalar_select %p42, %s43, %s44
      %p48 = pneg %p42
      %p49 = scmp.eq.s32.totalorder %s17, 3
      %p50 = por %p48, %p49
      %p51 = scmp.ne.s32.totalorder %s43, %s46
      %p52 = scmp.eq.s32.totalorder %s17, 0
      %p53 = por %p51, %p52
      %p54 = scmp.ne.s32.totalorder %s43, %s46
      %p55 = scmp.eq.s32.totalorder %s22, 3
      %p56 = por %p54, %p55
      %p57 = scmp.ne.s32.totalorder %s46, %s47
      %p58 = scmp.eq.s32.totalorder %s22, 0
      %p59 = por %p57, %p58
      %p60 = scmp.ne.s32.totalorder %s46, %s47
      %p61 = scmp.eq.s32.totalorder %s23, 3
      %p62 = por %p60, %p61
      %p64 = scmp.ne.s32.totalorder %s47, %s63
      %p65 = scmp.eq.s32.totalorder %s23, 0
      %p66 = por %p64, %p65
      %s68 = sadd.s32 %s67, 1
      %p71 = scmp.eq.s32.totalorder %s17, 3
      %p72 = scmp.ne.s32.totalorder %s67, %s69
      %p73 = scmp.eq.s32.totalorder %s17, 0
      %p74 = por %p72, %p73
      %p75 = scmp.ne.s32.totalorder %s67, %s69
      %p76 = scmp.eq.s32.totalorder %s22, 3
      %p77 = por %p75, %p76
      %p78 = scmp.ne.s32.totalorder %s69, %s70
      %p79 = scmp.eq.s32.totalorder %s22, 0
      %p80 = por %p78, %p79
      %p81 = scmp.ne.s32.totalorder %s69, %s70
      %p82 = scmp.eq.s32.totalorder %s23, 3
      %p83 = por %p81, %p82
      %p85 = scmp.ne.s32.totalorder %s70, %s84
      %p86 = scmp.eq.s32.totalorder %s23, 0
      %p87 = por %p85, %p86
      %s88 = smul.u32 %s24, 2
      %s89 = sadd.s32 %s88, %s25
      %s90 = smul.u32 %s36, 2
      %s91 = sadd.s32 %s90, %s32
      %s92 = ssub.s32 %s89, %s91
      %p93 = scmp.eq.s32.totalorder %s92, 0
      %s95 = sadd.s32 %s94, 1
      %s96 = scalar_select %p93, %s94, %s95
      %p99 = pneg %p93
      %p100 = scmp.eq.s32.totalorder %s17, 3
      %p101 = por %p99, %p100
      %p102 = scmp.ne.s32.totalorder %s94, %s97
      %p103 = scmp.eq.s32.totalorder %s17, 0
      %p104 = por %p102, %p103
      %p105 = scmp.ne.s32.totalorder %s94, %s97
      %p106 = scmp.eq.s32.totalorder %s22, 3
      %p107 = por %p105, %p106
      %p108 = scmp.ne.s32.totalorder %s97, %s98
      %p109 = scmp.eq.s32.totalorder %s22, 0
      %p110 = por %p108, %p109
      %p111 = scmp.ne.s32.totalorder %s97, %s98
      %p112 = scmp.eq.s32.totalorder %s23, 3
      %p113 = por %p111, %p112
      %p115 = scmp.ne.s32.totalorder %s98, %s114
      %p116 = scmp.eq.s32.totalorder %s23, 0
      %p117 = por %p115, %p116
      %s118 = ssub.s32 %s24, %s36
      %p119 = scmp.eq.s32.totalorder %s118, 0
      %s121 = sadd.s32 %s120, 1
      %s122 = scalar_select %p119, %s120, %s121
      %p125 = pneg %p119
      %p126 = scmp.eq.s32.totalorder %s17, 3
      %p127 = por %p125, %p126
      %p128 = scmp.ne.s32.totalorder %s120, %s123
      %p129 = scmp.eq.s32.totalorder %s17, 0
      %p130 = por %p128, %p129
      %p131 = scmp.ne.s32.totalorder %s120, %s123
      %p132 = scmp.eq.s32.totalorder %s22, 3
      %p133 = por %p131, %p132
      %p134 = scmp.ne.s32.totalorder %s123, %s124
      %p135 = scmp.eq.s32.totalorder %s22, 0
      %p136 = por %p134, %p135
      %p137 = scmp.ne.s32.totalorder %s123, %s124
      %p138 = scmp.eq.s32.totalorder %s23, 3
      %p139 = por %p137, %p138
      %p141 = scmp.ne.s32.totalorder %s124, %s140
      %p142 = scmp.eq.s32.totalorder %s23, 0
      %p143 = por %p141, %p142
      %s144 = ssub.s32 %s24, %s36
      %p145 = scmp.eq.s32.totalorder %s144, 0
      %s147 = sadd.s32 %s146, 1
      %s148 = scalar_select %p145, %s146, %s147
      %p151 = pneg %p145
      %p152 = scmp.eq.s32.totalorder %s17, 3
      %p153 = por %p151, %p152
      %p154 = scmp.ne.s32.totalorder %s146, %s149
      %p155 = scmp.eq.s32.totalorder %s17, 0
      %p156 = por %p154, %p155
      %p157 = scmp.ne.s32.totalorder %s146, %s149
      %p158 = scmp.eq.s32.totalorder %s22, 3
      %p159 = por %p157, %p158
      %p160 = scmp.ne.s32.totalorder %s149, %s150
      %p161 = scmp.eq.s32.totalorder %s22, 0
      %p162 = por %p160, %p161
      %p163 = scmp.ne.s32.totalorder %s149, %s150
      %p164 = scmp.eq.s32.totalorder %s23, 3
      %p165 = por %p163, %p164
      %p167 = scmp.ne.s32.totalorder %s150, %s166
      %p168 = scmp.eq.s32.totalorder %s23, 0
      %p169 = por %p167, %p168
      %p170 = scmp.le.s32.totalorder 1, %s17
      %p171 = scmp.lt.s32.totalorder %s17, 5
      %p172 = pnand %p170, %p171
      %p173 = pneg %p172
      // Predicated region
      $region9: #{tpu_custom_call.1} parent=5 // pred_check
        _
      $region10: #{tpu_custom_call.1} parent=5 // pred_check_branch
        %175 = sbr.rel (%p172) target = $region12
      $region11: #{tpu_custom_call.1} parent=5 // pred_region
        %s176 = ssub.s32 %s17, 1
        // Predicated region
        $region13: #{tpu_custom_call.1} parent=11 // pred_check
          %p177 = pneg %p80
        $region14: #{tpu_custom_call.1} parent=11 // pred_check_branch
          %179 = sbr.rel (%p177) target = $region16
        $region15: #{tpu_custom_call.1} parent=11 // pred_region
          _
        $region16: #{tpu_custom_call.1} parent=11 // pred_fallthru
          _
      $region12: #{tpu_custom_call.1} parent=5 // pred_fallthru
        _
      %p180 = scmp.lt.s32.totalorder %s17, 4
      // Predicated region
      $region17: #{tpu_custom_call.1} parent=5 // pred_check
        %p181 = pneg %p180
      $region18: #{tpu_custom_call.1} parent=5 // pred_check_branch
        %183 = sbr.rel (%p181) target = $region20
      $region19: #{tpu_custom_call.1} parent=5 // pred_region
        // Predicated region
        $region21: #{tpu_custom_call.1} parent=19 // pred_check
          %p184 = pneg %p53
        $region22: #{tpu_custom_call.1} parent=19 // pred_check_branch
          %186 = sbr.rel (%p184) target = $region24
        $region23: #{tpu_custom_call.1} parent=19 // pred_region
          %s187 = smul.u32 %s24, 2
          %s188 = sadd.s32 %s187, %s25
          %p189 = scmp.lt.s32.totalorder %s188, 3
          %s190 = scalar_select %p189, %s188, 3
          %s191 = smul.addr %s190, 30
          %s192 = smul.addr %s191, 4
          %s193 = scalar_lea.vmem %s0, %s192
          %s194 = smul.u32 %s24, 2
          %s195 = sadd.s32 %s194, %s25
        $region24: #{tpu_custom_call.1} parent=19 // pred_fallthru
          _
      $region20: #{tpu_custom_call.1} parent=5 // pred_fallthru
        _
      %p196 = scmp.le.s32.totalorder 1, %s17
      %p197 = scmp.lt.s32.totalorder %s17, 5
      %p198 = pnand %p196, %p197
      %p199 = pneg %p198
      // Predicated region
      $region25: #{tpu_custom_call.1} parent=5 // pred_check
        _
      $region26: #{tpu_custom_call.1} parent=5 // pred_check_branch
        %201 = sbr.rel (%p198) target = $region28
      $region27: #{tpu_custom_call.1} parent=5 // pred_region
        %s202 = ssub.s32 %s17, 1
        %s203 = smul.u32 %s26, 2
        %s204 = sadd.s32 %s203, %s27
        %p205 = scmp.lt.s32.totalorder %s204, 3
        %s206 = scalar_select %p205, %s204, 3
        %s207 = smul.addr %s206, 30
        %s208 = smul.addr %s207, 4
        %s209 = scalar_lea.vmem %s0, %s208
        %p210 = pneg %p59
        %p211 = pneg %p56
        %p212 = pneg %p80
        %p213 = pneg %p77
        %p214 = pneg %p110
        %p215 = pneg %p107
        %s216 = sand.u32 %s97, 1
        %s217 = scalar_lea.sflag [#allocation3], %s216
        %s218 = sand.u32 %s97, 1
        %s219 = smul.addr %s218, 64
        %s220 = scalar_lea.vmem [#allocation2], %s219
        %p221 = pneg %p136
        %p222 = pneg %p133
        %s223 = sand.u32 %s22, 1
        %s224 = scalar_lea.sflag [#allocation5], %s223
        %s225 = sand.u32 %s123, 1
        %s226 = scalar_lea.vmem [#allocation4], %s225
        %p227 = pneg %p162
        %p228 = pneg %p159
        %s229 = sand.u32 %s22, 1
        %s230 = scalar_lea.sflag [#allocation5], %s229
        %s231 = sand.u32 %s149, 1
        %s232 = scalar_lea.vmem [#allocation6], %s231
        %s233 = smul.u32 %s26, 2
        %s234 = sadd.s32 %s233, %s27
        %p235 = scmp.lt.s32.totalorder %s234, 3
        %s236 = scalar_select %p235, %s234, 3
        %s237 = smul.addr %s236, 30
        %s238 = smul.addr %s237, 4
        %s239 = scalar_lea.vmem %s0, %s238
        %s240 = smul.u32 %s26, 2
        %s241 = sadd.s32 %s240, %s27
        %s242 = smul.u32 %s26, 2
        %s243 = sadd.s32 %s242, %s27
        %v245 = vld [vmem:[%s239] sm:$0xf]
        %v246 = vld [vmem:[%s239 + $0x4] sm:$0xf]
        %v247 = vld [vmem:[%s239 + $0x8] sm:$0x1]
        %v248 = vld [vmem:[%s239 + $0xc] sm:$0xf]
        %v249 = vld [vmem:[%s239 + $0x10] sm:$0xf]
        %v250 = vld [vmem:[%s239 + $0x14] sm:$0x1]
        %v251 = vld [vmem:[%s239 + $0x18] sm:$0xf]
        %v252 = vld [vmem:[%s239 + $0x1c] sm:$0xf]
        %v253 = vld [vmem:[%s239 + $0x20] sm:$0x1]
        %v254 = vld [vmem:[%s239 + $0x24] sm:$0xf]
        %v255 = vld [vmem:[%s239 + $0x28] sm:$0xf]
        %v256 = vld [vmem:[%s239 + $0x2c] sm:$0x1]
        %v257 = vld [vmem:[%s239 + $0x30] sm:$0xf]
        %v258 = vld [vmem:[%s239 + $0x34] sm:$0xf]
        %v259 = vld [vmem:[%s239 + $0x38] sm:$0x1]
        %v260 = vld [vmem:[%s239 + $0x3c] sm:$0xf]
        %v261 = vld [vmem:[%s239 + $0x40] sm:$0xf]
        %v262 = vld [vmem:[%s239 + $0x44] sm:$0x1]
        %v263 = vld [vmem:[%s239 + $0x48] sm:$0xf]
        %v264 = vld [vmem:[%s239 + $0x4c] sm:$0xf]
        %v265 = vld [vmem:[%s239 + $0x50] sm:$0x1]
        %v266 = vld [vmem:[%s239 + $0x54] sm:$0xf]
        %v267 = vld [vmem:[%s239 + $0x58] sm:$0xf]
        %v268 = vld [vmem:[%s239 + $0x5c] sm:$0x1]
        %v269 = vunpack.c.l.bf16 %v245
        %v270 = vunpack.c.l.bf16 %v246
        %v271 = vunpack.c.l.bf16 %v247
        %v272 = vunpack.c.l.bf16 %v248
        %v273 = vunpack.c.l.bf16 %v249
        %v274 = vunpack.c.l.bf16 %v250
        %v275 = vunpack.c.l.bf16 %v251
        %v276 = vunpack.c.l.bf16 %v252
        %v277 = vunpack.c.l.bf16 %v253
        %v278 = vunpack.c.l.bf16 %v254
        %v279 = vunpack.c.l.bf16 %v255
        %v280 = vunpack.c.l.bf16 %v256
        %v281 = vunpack.c.l.bf16 %v257
        %v282 = vunpack.c.l.bf16 %v258
        %v283 = vunpack.c.l.bf16 %v259
        %v284 = vunpack.c.l.bf16 %v260
        %v285 = vunpack.c.l.bf16 %v261
        %v286 = vunpack.c.l.bf16 %v262
        %v287 = vunpack.c.l.bf16 %v263
        %v288 = vunpack.c.l.bf16 %v264
        %v289 = vunpack.c.l.bf16 %v265
        %v290 = vunpack.c.l.bf16 %v266
        %v291 = vunpack.c.l.bf16 %v267
        %v292 = vunpack.c.l.bf16 %v268
        %v293 = vpack.c.bf16 %v270, %v269
        %v294 = vpack.c.bf16 %v273, %v272
        %v295 = vpack.c.bf16 %v276, %v275
        %v296 = vpack.c.bf16 %v279, %v278
        %v297 = vpack.c.bf16 %v282, %v281
        %v298 = vpack.c.bf16 %v285, %v284
        %v299 = vpack.c.bf16 %v288, %v287
        %v300 = vpack.c.bf16 %v291, %v290
        %v301 = vld [vmem:[%s1] sm:$0xf]
        %v302 = vld [vmem:[%s1 + $0x4] sm:$0xf]
        %v303 = vld [vmem:[%s1 + $0x8] sm:$0xf]
        %v304 = vld [vmem:[%s1 + $0xc] sm:$0xf]
        %v305 = vld [vmem:[%s1 + $0x10] sm:$0xf]
        %v306 = vld [vmem:[%s1 + $0x14] sm:$0xf]
        %v307 = vld [vmem:[%s1 + $0x18] sm:$0xf]
        %v308 = vld [vmem:[%s1 + $0x1c] sm:$0xf]
        %v309 = vld [vmem:[%s1 + $0x20] sm:$0xf]
        %v310 = vld [vmem:[%s1 + $0x24] sm:$0xf]
        %v311 = vld [vmem:[%s1 + $0x28] sm:$0xf]
        %v312 = vld [vmem:[%s1 + $0x2c] sm:$0xf]
        %v313 = vld [vmem:[%s1 + $0x30] sm:$0xf]
        %v314 = vld [vmem:[%s1 + $0x34] sm:$0xf]
        %v315 = vld [vmem:[%s1 + $0x38] sm:$0xf]
        %v316 = vld [vmem:[%s1 + $0x3c] sm:$0xf]
        %vm341 = vcmask 1046528
        %v342 = vrot.slane %v269, 1
        %v343 = vrot.slane %v270, 1
        %v344 = vsel %vm341, %v342, %v343
        %v345 = vrot.slane %v271, 1
        %v346 = vsel %vm341, %v343, %v345
        %v347 = vrot.slane %v272, 1
        %v348 = vrot.slane %v273, 1
        %v349 = vsel %vm341, %v347, %v348
        %v350 = vrot.slane %v274, 1
        %v351 = vsel %vm341, %v348, %v350
        %v352 = vrot.slane %v275, 1
        %v353 = vrot.slane %v276, 1
        %v354 = vsel %vm341, %v352, %v353
        %v355 = vrot.slane %v277, 1
        %v356 = vsel %vm341, %v353, %v355
        %v357 = vrot.slane %v278, 1
        %v358 = vrot.slane %v279, 1
        %v359 = vsel %vm341, %v357, %v358
        %v360 = vrot.slane %v280, 1
        %v361 = vsel %vm341, %v358, %v360
        %v362 = vrot.slane %v281, 1
        %v363 = vrot.slane %v282, 1
        %v364 = vsel %vm341, %v362, %v363
        %v365 = vrot.slane %v283, 1
        %v366 = vsel %vm341, %v363, %v365
        %v367 = vrot.slane %v284, 1
        %v368 = vrot.slane %v285, 1
        %v369 = vsel %vm341, %v367, %v368
        %v370 = vrot.slane %v286, 1
        %v371 = vsel %vm341, %v368, %v370
        %v372 = vrot.slane %v287, 1
        %v373 = vrot.slane %v288, 1
        %v374 = vsel %vm341, %v372, %v373
        %v375 = vrot.slane %v289, 1
        %v376 = vsel %vm341, %v373, %v375
        %v377 = vrot.slane %v290, 1
        %v378 = vrot.slane %v291, 1
        %v379 = vsel %vm341, %v377, %v378
        %v380 = vrot.slane %v292, 1
        %v381 = vsel %vm341, %v378, %v380
        %v398 = vpack.c.bf16 %v346, %v344
        %v399 = vpack.c.bf16 %v351, %v349
        %v400 = vpack.c.bf16 %v356, %v354
        %v401 = vpack.c.bf16 %v361, %v359
        %v402 = vpack.c.bf16 %v366, %v364
        %v403 = vpack.c.bf16 %v371, %v369
        %v404 = vpack.c.bf16 %v376, %v374
        %v405 = vpack.c.bf16 %v381, %v379
        %s406 = scalar_lea.vmem %s1, 64
        %v407 = vld [vmem:[%s406] sm:$0xf]
        %v408 = vld [vmem:[%s406 + $0x4] sm:$0xf]
        %v409 = vld [vmem:[%s406 + $0x8] sm:$0xf]
        %v410 = vld [vmem:[%s406 + $0xc] sm:$0xf]
        %v411 = vld [vmem:[%s406 + $0x10] sm:$0xf]
        %v412 = vld [vmem:[%s406 + $0x14] sm:$0xf]
        %v413 = vld [vmem:[%s406 + $0x18] sm:$0xf]
        %v414 = vld [vmem:[%s406 + $0x1c] sm:$0xf]
        %v415 = vld [vmem:[%s406 + $0x20] sm:$0xf]
        %v416 = vld [vmem:[%s406 + $0x24] sm:$0xf]
        %v417 = vld [vmem:[%s406 + $0x28] sm:$0xf]
        %v418 = vld [vmem:[%s406 + $0x2c] sm:$0xf]
        %v419 = vld [vmem:[%s406 + $0x30] sm:$0xf]
        %v420 = vld [vmem:[%s406 + $0x34] sm:$0xf]
        %v421 = vld [vmem:[%s406 + $0x38] sm:$0xf]
        %v422 = vld [vmem:[%s406 + $0x3c] sm:$0xf]
        %v439 = vunpack.c.l.b16 %v407
        %v440 = vunpack.c.l.b16 %v408
        %v441 = vunpack.c.l.b16 %v409
        %v442 = vunpack.c.l.b16 %v410
        %v443 = vunpack.c.l.b16 %v411
        %v444 = vunpack.c.l.b16 %v412
        %v445 = vunpack.c.l.b16 %v413
        %v446 = vunpack.c.l.b16 %v414
        %v447 = vunpack.c.l.b16 %v415
        %v448 = vunpack.c.l.b16 %v416
        %v449 = vunpack.c.l.b16 %v417
        %v450 = vunpack.c.l.b16 %v418
        %v451 = vunpack.c.l.b16 %v419
        %v452 = vunpack.c.l.b16 %v420
        %v453 = vunpack.c.l.b16 %v421
        %v454 = vunpack.c.l.b16 %v422
        %v455 = vpack.c.b16 %v440, %v439
        %v456 = vpack.c.b16 %v442, %v441
        %v457 = vpack.c.b16 %v444, %v443
        %v458 = vpack.c.b16 %v446, %v445
        %v459 = vpack.c.b16 %v448, %v447
        %v460 = vpack.c.b16 %v450, %v449
        %v461 = vpack.c.b16 %v452, %v451
        %v462 = vpack.c.b16 %v454, %v453
        %471 = vmatprep.subr.bf16.mxu0 0
        %472 = vmatpush1.bf16.msra.mxu0 %v455
        %473 = vmatprep.subr.bf16.mxu0 0
        %474 = vmatpush1.bf16.msra.mxu0 %v456
        %475 = vmatprep.subr.bf16.mxu0 0
        %476 = vmatpush1.bf16.msra.mxu0 %v457
        %477 = vmatprep.subr.bf16.mxu0 0
        %478 = vmatpush1.bf16.msra.mxu0 %v458
        %479 = vmatprep.subr.bf16.mxu0 0
        %480 = vmatpush1.bf16.msra.mxu0 %v459
        %481 = vmatprep.subr.bf16.mxu0 0
        %482 = vmatpush1.bf16.msra.mxu0 %v460
        %483 = vmatprep.subr.bf16.mxu0 0
        %484 = vmatpush1.bf16.msra.mxu0 %v461
        %485 = vmatprep.subr.bf16.mxu0 0
        %486 = vmatpush1.bf16.msra.mxu0 %v462
        %487 = vmatprep.subr.bf16.mxu0 0
        %488 = vmatpush1.bf16.msra.mxu0 0
        %489 = vmatprep.subr.bf16.mxu0 0
        %490 = vmatpush1.bf16.msra.mxu0 0
        %491 = vmatprep.subr.bf16.mxu0 0
        %492 = vmatpush1.bf16.msra.mxu0 0
        %493 = vmatprep.subr.bf16.mxu0 0
        %494 = vmatpush1.bf16.msra.mxu0 0
        %495 = vmatprep.subr.bf16.mxu0 0
        %496 = vmatpush1.bf16.msra.mxu0 0
        %497 = vmatprep.subr.bf16.mxu0 0
        %498 = vmatpush1.bf16.msra.mxu0 0
        %499 = vmatprep.subr.bf16.mxu0 0
        %500 = vmatpush1.bf16.msra.mxu0 0
        %501 = vmatprep.subr.bf16.mxu0 0
        %502 = vmatpush1.bf16.msra.mxu0 0
        %503 = vmatprep.mubr.bf16.mxu0 0
        %504 = vmatmul.mubr.bf16.gmra.mrb[0].mxu0 %v398
        %v505 = vpop.f32.mrb[0].mxu0
        %v506 = vadd.f32 0.0, %v505
        %v507 = vpop.f32.mrb[0].mxu0
        %v508 = vpop.f32.mrb[0].mxu0
        %v509 = vadd.f32 0.0, %v508
        %v510 = vpop.f32.mrb[0].mxu0
        %511 = vmatprep.mubr.bf16.mxu0 0
        %512 = vmatmul.mubr.bf16.gmra.mrb[0].mxu0 %v399
        %v513 = vpop.f32.mrb[0].mxu0
        %v514 = vadd.f32 0.0, %v513
        %v515 = vpop.f32.mrb[0].mxu0
        %v516 = vpop.f32.mrb[0].mxu0
        %v517 = vadd.f32 0.0, %v516
        %v518 = vpop.f32.mrb[0].mxu0
        %519 = vmatprep.mubr.bf16.mxu0 0
        %520 = vmatmul.mubr.bf16.gmra.mrb[0].mxu0 %v400
        %v521 = vpop.f32.mrb[0].mxu0
        %v522 = vadd.f32 0.0, %v521
        %v523 = vpop.f32.mrb[0].mxu0
        %v524 = vpop.f32.mrb[0].mxu0
        %v525 = vadd.f32 0.0, %v524
        %v526 = vpop.f32.mrb[0].mxu0
        %527 = vmatprep.mubr.bf16.mxu0 0
        %528 = vmatmul.mubr.bf16.gmra.mrb[0].mxu0 %v401
        %v529 = vpop.f32.mrb[0].mxu0
        %v530 = vadd.f32 0.0, %v529
        %v531 = vpop.f32.mrb[0].mxu0
        %v532 = vpop.f32.mrb[0].mxu0
        %v533 = vadd.f32 0.0, %v532
        %v534 = vpop.f32.mrb[0].mxu0
        %535 = vmatprep.mubr.bf16.mxu0 0
        %536 = vmatmul.mubr.bf16.gmra.mrb[0].mxu0 %v402
        %v537 = vpop.f32.mrb[0].mxu0
        %v538 = vadd.f32 0.0, %v537
        %v539 = vpop.f32.mrb[0].mxu0
        %v540 = vpop.f32.mrb[0].mxu0
        %v541 = vadd.f32 0.0, %v540
        %v542 = vpop.f32.mrb[0].mxu0
        %543 = vmatprep.mubr.bf16.mxu0 0
        %544 = vmatmul.mubr.bf16.gmra.mrb[0].mxu0 %v403
        %v545 = vpop.f32.mrb[0].mxu0
        %v546 = vadd.f32 0.0, %v545
        %v547 = vpop.f32.mrb[0].mxu0
        %v548 = vpop.f32.mrb[0].mxu0
        %v549 = vadd.f32 0.0, %v548
        %v550 = vpop.f32.mrb[0].mxu0
        %551 = vmatprep.mubr.bf16.mxu0 0
        %552 = vmatmul.mubr.bf16.gmra.mrb[0].mxu0 %v404
        %v553 = vpop.f32.mrb[0].mxu0
        %v554 = vadd.f32 0.0, %v553
        %v555 = vpop.f32.mrb[0].mxu0
        %v556 = vpop.f32.mrb[0].mxu0
        %v557 = vadd.f32 0.0, %v556
        %v558 = vpop.f32.mrb[0].mxu0
        %559 = vmatprep.mubr.bf16.mxu0 0
        %560 = vmatmul.mubr.bf16.gmra.mrb[0].mxu0 %v405
        %v561 = vpop.f32.mrb[0].mxu0
        %v562 = vadd.f32 0.0, %v561
        %v563 = vpop.f32.mrb[0].mxu0
        %v564 = vpop.f32.mrb[0].mxu0
        %v565 = vadd.f32 0.0, %v564
        %v566 = vpop.f32.mrb[0].mxu0
        %567 = vdwg.mxu0
        %v584 = vunpack.c.l.b16 %v301
        %v585 = vunpack.c.l.b16 %v302
        %v586 = vunpack.c.l.b16 %v303
        %v587 = vunpack.c.l.b16 %v304
        %v588 = vunpack.c.l.b16 %v305
        %v589 = vunpack.c.l.b16 %v306
        %v590 = vunpack.c.l.b16 %v307
        %v591 = vunpack.c.l.b16 %v308
        %v592 = vunpack.c.l.b16 %v309
        %v593 = vunpack.c.l.b16 %v310
        %v594 = vunpack.c.l.b16 %v311
        %v595 = vunpack.c.l.b16 %v312
        %v596 = vunpack.c.l.b16 %v313
        %v597 = vunpack.c.l.b16 %v314
        %v598 = vunpack.c.l.b16 %v315
        %v599 = vunpack.c.l.b16 %v316
        %v600 = vpack.c.b16 %v585, %v584
        %v601 = vpack.c.b16 %v587, %v586
        %v602 = vpack.c.b16 %v589, %v588
        %v603 = vpack.c.b16 %v591, %v590
        %v604 = vpack.c.b16 %v593, %v592
        %v605 = vpack.c.b16 %v595, %v594
        %v606 = vpack.c.b16 %v597, %v596
        %v607 = vpack.c.b16 %v599, %v598
        %616 = vmatprep.subr.bf16.mxu0 0
        %617 = vmatpush1.bf16.msra.mxu0 %v600
        %618 = vmatprep.subr.bf16.mxu0 0
        %619 = vmatpush1.bf16.msra.mxu0 %v601
        %620 = vmatprep.subr.bf16.mxu0 0
        %621 = vmatpush1.bf16.msra.mxu0 %v602
        %622 = vmatprep.subr.bf16.mxu0 0
        %623 = vmatpush1.bf16.msra.mxu0 %v603
        %624 = vmatprep.subr.bf16.mxu0 0
        %625 = vmatpush1.bf16.msra.mxu0 %v604
        %626 = vmatprep.subr.bf16.mxu0 0
        %627 = vmatpush1.bf16.msra.mxu0 %v605
        %628 = vmatprep.subr.bf16.mxu0 0
        %629 = vmatpush1.bf16.msra.mxu0 %v606
        %630 = vmatprep.subr.bf16.mxu0 0
        %631 = vmatpush1.bf16.msra.mxu0 %v607
        %632 = vmatprep.subr.bf16.mxu0 0
        %633 = vmatpush1.bf16.msra.mxu0 0
        %634 = vmatprep.subr.bf16.mxu0 0
        %635 = vmatpush1.bf16.msra.mxu0 0
        %636 = vmatprep.subr.bf16.mxu0 0
        %637 = vmatpush1.bf16.msra.mxu0 0
        %638 = vmatprep.subr.bf16.mxu0 0
        %639 = vmatpush1.bf16.msra.mxu0 0
        %640 = vmatprep.subr.bf16.mxu0 0
        %641 = vmatpush1.bf16.msra.mxu0 0
        %642 = vmatprep.subr.bf16.mxu0 0
        %643 = vmatpush1.bf16.msra.mxu0 0
        %644 = vmatprep.subr.bf16.mxu0 0
        %645 = vmatpush1.bf16.msra.mxu0 0
        %646 = vmatprep.subr.bf16.mxu0 0
        %647 = vmatpush1.bf16.msra.mxu0 0
        %648 = vmatprep.mubr.bf16.mxu0 0
        %649 = vmatmul.mubr.bf16.gmra.mrb[0].mxu0 %v293
        %v650 = vpop.f32.mrb[0].mxu0
        %v651 = vadd.f32 %v506, %v650
        %v652 = vpop.f32.mrb[0].mxu0
        %v653 = vpop.f32.mrb[0].mxu0
        %v654 = vadd.f32 %v509, %v653
        %v655 = vpop.f32.mrb[0].mxu0
        %656 = vmatprep.mubr.bf16.mxu0 0
        %657 = vmatmul.mubr.bf16.gmra.mrb[0].mxu0 %v294
        %v658 = vpop.f32.mrb[0].mxu0
        %v659 = vadd.f32 %v514, %v658
        %v660 = vpop.f32.mrb[0].mxu0
        %v661 = vpop.f32.mrb[0].mxu0
        %v662 = vadd.f32 %v517, %v661
        %v663 = vpop.f32.mrb[0].mxu0
        %664 = vmatprep.mubr.bf16.mxu0 0
        %665 = vmatmul.mubr.bf16.gmra.mrb[0].mxu0 %v295
        %v666 = vpop.f32.mrb[0].mxu0
        %v667 = vadd.f32 %v522, %v666
        %v668 = vpop.f32.mrb[0].mxu0
        %v669 = vpop.f32.mrb[0].mxu0
        %v670 = vadd.f32 %v525, %v669
        %v671 = vpop.f32.mrb[0].mxu0
        %672 = vmatprep.mubr.bf16.mxu0 0
        %673 = vmatmul.mubr.bf16.gmra.mrb[0].mxu0 %v296
        %v674 = vpop.f32.mrb[0].mxu0
        %v675 = vadd.f32 %v530, %v674
        %v676 = vpop.f32.mrb[0].mxu0
        %v677 = vpop.f32.mrb[0].mxu0
        %v678 = vadd.f32 %v533, %v677
        %v679 = vpop.f32.mrb[0].mxu0
        %680 = vmatprep.mubr.bf16.mxu0 0
        %681 = vmatmul.mubr.bf16.gmra.mrb[0].mxu0 %v297
        %v682 = vpop.f32.mrb[0].mxu0
        %v683 = vadd.f32 %v538, %v682
        %v684 = vpop.f32.mrb[0].mxu0
        %v685 = vpop.f32.mrb[0].mxu0
        %v686 = vadd.f32 %v541, %v685
        %v687 = vpop.f32.mrb[0].mxu0
        %688 = vmatprep.mubr.bf16.mxu0 0
        %689 = vmatmul.mubr.bf16.gmra.mrb[0].mxu0 %v298
        %v690 = vpop.f32.mrb[0].mxu0
        %v691 = vadd.f32 %v546, %v690
        %v692 = vpop.f32.mrb[0].mxu0
        %v693 = vpop.f32.mrb[0].mxu0
        %v694 = vadd.f32 %v549, %v693
        %v695 = vpop.f32.mrb[0].mxu0
        %696 = vmatprep.mubr.bf16.mxu0 0
        %697 = vmatmul.mubr.bf16.gmra.mrb[0].mxu0 %v299
        %v698 = vpop.f32.mrb[0].mxu0
        %v699 = vadd.f32 %v554, %v698
        %v700 = vpop.f32.mrb[0].mxu0
        %v701 = vpop.f32.mrb[0].mxu0
        %v702 = vadd.f32 %v557, %v701
        %v703 = vpop.f32.mrb[0].mxu0
        %704 = vmatprep.mubr.bf16.mxu0 0
        %705 = vmatmul.mubr.bf16.gmra.mrb[0].mxu0 %v300
        %v706 = vpop.f32.mrb[0].mxu0
        %v707 = vadd.f32 %v562, %v706
        %v708 = vpop.f32.mrb[0].mxu0
        %v709 = vpop.f32.mrb[0].mxu0
        %v710 = vadd.f32 %v565, %v709
        %v711 = vpop.f32.mrb[0].mxu0
        %712 = vdwg.mxu0
        %vm713 = vcmask 1045504
        %v714 = vrot.slane %v269, 2
        %v715 = vrot.slane %v270, 2
        %v716 = vsel %vm713, %v714, %v715
        %v717 = vrot.slane %v271, 2
        %v718 = vsel %vm713, %v715, %v717
        %v719 = vrot.slane %v272, 2
        %v720 = vrot.slane %v273, 2
        %v721 = vsel %vm713, %v719, %v720
        %v722 = vrot.slane %v274, 2
        %v723 = vsel %vm713, %v720, %v722
        %v724 = vrot.slane %v275, 2
        %v725 = vrot.slane %v276, 2
        %v726 = vsel %vm713, %v724, %v725
        %v727 = vrot.slane %v277, 2
        %v728 = vsel %vm713, %v725, %v727
        %v729 = vrot.slane %v278, 2
        %v730 = vrot.slane %v279, 2
        %v731 = vsel %vm713, %v729, %v730
        %v732 = vrot.slane %v280, 2
        %v733 = vsel %vm713, %v730, %v732
        %v734 = vrot.slane %v281, 2
        %v735 = vrot.slane %v282, 2
        %v736 = vsel %vm713, %v734, %v735
        %v737 = vrot.slane %v283, 2
        %v738 = vsel %vm713, %v735, %v737
        %v739 = vrot.slane %v284, 2
        %v740 = vrot.slane %v285, 2
        %v741 = vsel %vm713, %v739, %v740
        %v742 = vrot.slane %v286, 2
        %v743 = vsel %vm713, %v740, %v742
        %v744 = vrot.slane %v287, 2
        %v745 = vrot.slane %v288, 2
        %v746 = vsel %vm713, %v744, %v745
        %v747 = vrot.slane %v289, 2
        %v748 = vsel %vm713, %v745, %v747
        %v749 = vrot.slane %v290, 2
        %v750 = vrot.slane %v291, 2
        %v751 = vsel %vm713, %v749, %v750
        %v752 = vrot.slane %v292, 2
        %v753 = vsel %vm713, %v750, %v752
        %v770 = vpack.c.bf16 %v718, %v716
        %v771 = vpack.c.bf16 %v723, %v721
        %v772 = vpack.c.bf16 %v728, %v726
        %v773 = vpack.c.bf16 %v733, %v731
        %v774 = vpack.c.bf16 %v738, %v736
        %v775 = vpack.c.bf16 %v743, %v741
        %v776 = vpack.c.bf16 %v748, %v746
        %v777 = vpack.c.bf16 %v753, %v751
        %s778 = scalar_lea.vmem %s1, 128
        %v779 = vld [vmem:[%s778] sm:$0xf]
        %v780 = vld [vmem:[%s778 + $0x4] sm:$0xf]
        %v781 = vld [vmem:[%s778 + $0x8] sm:$0xf]
        %v782 = vld [vmem:[%s778 + $0xc] sm:$0xf]
        %v783 = vld [vmem:[%s778 + $0x10] sm:$0xf]
        %v784 = vld [vmem:[%s778 + $0x14] sm:$0xf]
        %v785 = vld [vmem:[%s778 + $0x18] sm:$0xf]
        %v786 = vld [vmem:[%s778 + $0x1c] sm:$0xf]
        %v787 = vld [vmem:[%s778 + $0x20] sm:$0xf]
        %v788 = vld [vmem:[%s778 + $0x24] sm:$0xf]
        %v789 = vld [vmem:[%s778 + $0x28] sm:$0xf]
        %v790 = vld [vmem:[%s778 + $0x2c] sm:$0xf]
        %v791 = vld [vmem:[%s778 + $0x30] sm:$0xf]
        %v792 = vld [vmem:[%s778 + $0x34] sm:$0xf]
        %v793 = vld [vmem:[%s778 + $0x38] sm:$0xf]
        %v794 = vld [vmem:[%s778 + $0x3c] sm:$0xf]
        %v811 = vunpack.c.l.b16 %v779
        %v812 = vunpack.c.l.b16 %v780
        %v813 = vunpack.c.l.b16 %v781
        %v814 = vunpack.c.l.b16 %v782
        %v815 = vunpack.c.l.b16 %v783
        %v816 = vunpack.c.l.b16 %v784
        %v817 = vunpack.c.l.b16 %v785
        %v818 = vunpack.c.l.b16 %v786
        %v819 = vunpack.c.l.b16 %v787
        %v820 = vunpack.c.l.b16 %v788
        %v821 = vunpack.c.l.b16 %v789
        %v822 = vunpack.c.l.b16 %v790
        %v823 = vunpack.c.l.b16 %v791
        %v824 = vunpack.c.l.b16 %v792
        %v825 = vunpack.c.l.b16 %v793
        %v826 = vunpack.c.l.b16 %v794
        %v827 = vpack.c.b16 %v812, %v811
        %v828 = vpack.c.b16 %v814, %v813
        %v829 = vpack.c.b16 %v816, %v815
        %v830 = vpack.c.b16 %v818, %v817
        %v831 = vpack.c.b16 %v820, %v819
        %v832 = vpack.c.b16 %v822, %v821
        %v833 = vpack.c.b16 %v824, %v823
        %v834 = vpack.c.b16 %v826, %v825
        %843 = vmatprep.subr.bf16.mxu0 0
        %844 = vmatpush1.bf16.msra.mxu0 %v827
        %845 = vmatprep.subr.bf16.mxu0 0
        %846 = vmatpush1.bf16.msra.mxu0 %v828
        %847 = vmatprep.subr.bf16.mxu0 0
        %848 = vmatpush1.bf16.msra.mxu0 %v829
        %849 = vmatprep.subr.bf16.mxu0 0
        %850 = vmatpush1.bf16.msra.mxu0 %v830
        %851 = vmatprep.subr.bf16.mxu0 0
        %852 = vmatpush1.bf16.msra.mxu0 %v831
        %853 = vmatprep.subr.bf16.mxu0 0
        %854 = vmatpush1.bf16.msra.mxu0 %v832
        %855 = vmatprep.subr.bf16.mxu0 0
        %856 = vmatpush1.bf16.msra.mxu0 %v833
        %857 = vmatprep.subr.bf16.mxu0 0
        %858 = vmatpush1.bf16.msra.mxu0 %v834
        %859 = vmatprep.subr.bf16.mxu0 0
        %860 = vmatpush1.bf16.msra.mxu0 0
        %861 = vmatprep.subr.bf16.mxu0 0
        %862 = vmatpush1.bf16.msra.mxu0 0
        %863 = vmatprep.subr.bf16.mxu0 0
        %864 = vmatpush1.bf16.msra.mxu0 0
        %865 = vmatprep.subr.bf16.mxu0 0
        %866 = vmatpush1.bf16.msra.mxu0 0
        %867 = vmatprep.subr.bf16.mxu0 0
        %868 = vmatpush1.bf16.msra.mxu0 0
        %869 = vmatprep.subr.bf16.mxu0 0
        %870 = vmatpush1.bf16.msra.mxu0 0
        %871 = vmatprep.subr.bf16.mxu0 0
        %872 = vmatpush1.bf16.msra.mxu0 0
        %873 = vmatprep.subr.bf16.mxu0 0
        %874 = vmatpush1.bf16.msra.mxu0 0
        %875 = vmatprep.mubr.bf16.mxu0 0
        %876 = vmatmul.mubr.bf16.gmra.mrb[0].mxu0 %v770
        %v877 = vpop.f32.mrb[0].mxu0
        %v878 = vadd.f32 0.0, %v877
        %v879 = vpop.f32.mrb[0].mxu0
        %v880 = vpop.f32.mrb[0].mxu0
        %v881 = vadd.f32 0.0, %v880
        %v882 = vpop.f32.mrb[0].mxu0
        %883 = vmatprep.mubr.bf16.mxu0 0
        %884 = vmatmul.mubr.bf16.gmra.mrb[0].mxu0 %v771
        %v885 = vpop.f32.mrb[0].mxu0
        %v886 = vadd.f32 0.0, %v885
        %v887 = vpop.f32.mrb[0].mxu0
        %v888 = vpop.f32.mrb[0].mxu0
        %v889 = vadd.f32 0.0, %v888
        %v890 = vpop.f32.mrb[0].mxu0
        %891 = vmatprep.mubr.bf16.mxu0 0
        %892 = vmatmul.mubr.bf16.gmra.mrb[0].mxu0 %v772
        %v893 = vpop.f32.mrb[0].mxu0
        %v894 = vadd.f32 0.0, %v893
        %v895 = vpop.f32.mrb[0].mxu0
        %v896 = vpop.f32.mrb[0].mxu0
        %v897 = vadd.f32 0.0, %v896
        %v898 = vpop.f32.mrb[0].mxu0
        %899 = vmatprep.mubr.bf16.mxu0 0
        %900 = vmatmul.mubr.bf16.gmra.mrb[0].mxu0 %v773
        %v901 = vpop.f32.mrb[0].mxu0
        %v902 = vadd.f32 0.0, %v901
        %v903 = vpop.f32.mrb[0].mxu0
        %v904 = vpop.f32.mrb[0].mxu0
        %v905 = vadd.f32 0.0, %v904
        %v906 = vpop.f32.mrb[0].mxu0
        %907 = vmatprep.mubr.bf16.mxu0 0
        %908 = vmatmul.mubr.bf16.gmra.mrb[0].mxu0 %v774
        %v909 = vpop.f32.mrb[0].mxu0
        %v910 = vadd.f32 0.0, %v909
        %v911 = vpop.f32.mrb[0].mxu0
        %v912 = vpop.f32.mrb[0].mxu0
        %v913 = vadd.f32 0.0, %v912
        %v914 = vpop.f32.mrb[0].mxu0
        %915 = vmatprep.mubr.bf16.mxu0 0
        %916 = vmatmul.mubr.bf16.gmra.mrb[0].mxu0 %v775
        %v917 = vpop.f32.mrb[0].mxu0
        %v918 = vadd.f32 0.0, %v917
        %v919 = vpop.f32.mrb[0].mxu0
        %v920 = vpop.f32.mrb[0].mxu0
        %v921 = vadd.f32 0.0, %v920
        %v922 = vpop.f32.mrb[0].mxu0
        %923 = vmatprep.mubr.bf16.mxu0 0
        %924 = vmatmul.mubr.bf16.gmra.mrb[0].mxu0 %v776
        %v925 = vpop.f32.mrb[0].mxu0
        %v926 = vadd.f32 0.0, %v925
        %v927 = vpop.f32.mrb[0].mxu0
        %v928 = vpop.f32.mrb[0].mxu0
        %v929 = vadd.f32 0.0, %v928
        %v930 = vpop.f32.mrb[0].mxu0
        %931 = vmatprep.mubr.bf16.mxu0 0
        %932 = vmatmul.mubr.bf16.gmra.mrb[0].mxu0 %v777
        %v933 = vpop.f32.mrb[0].mxu0
        %v934 = vadd.f32 0.0, %v933
        %v935 = vpop.f32.mrb[0].mxu0
        %v936 = vpop.f32.mrb[0].mxu0
        %v937 = vadd.f32 0.0, %v936
        %v938 = vpop.f32.mrb[0].mxu0
        %939 = vdwg.mxu0
        %v940 = vadd.f32 %v651, %v878
        %v941 = vadd.f32 %v654, %v881
        %v942 = vadd.f32 %v659, %v886
        %v943 = vadd.f32 %v662, %v889
        %v944 = vadd.f32 %v667, %v894
        %v945 = vadd.f32 %v670, %v897
        %v946 = vadd.f32 %v675, %v902
        %v947 = vadd.f32 %v678, %v905
        %v948 = vadd.f32 %v683, %v910
        %v949 = vadd.f32 %v686, %v913
        %v950 = vadd.f32 %v691, %v918
        %v951 = vadd.f32 %v694, %v921
        %v952 = vadd.f32 %v699, %v926
        %v953 = vadd.f32 %v702, %v929
        %v954 = vadd.f32 %v707, %v934
        %v955 = vadd.f32 %v710, %v937
        %s956 = scalar_lea.vmem %s239, 12
        %v957 = vld [vmem:[%s956] sm:$0xf]
        %v958 = vld [vmem:[%s956 + $0x4] sm:$0xf]
        %v959 = vld [vmem:[%s956 + $0x8] sm:$0x1]
        %v960 = vld [vmem:[%s956 + $0xc] sm:$0xf]
        %v961 = vld [vmem:[%s956 + $0x10] sm:$0xf]
        %v962 = vld [vmem:[%s956 + $0x14] sm:$0x1]
        %v963 = vld [vmem:[%s956 + $0x18] sm:$0xf]
        %v964 = vld [vmem:[%s956 + $0x1c] sm:$0xf]
        %v965 = vld [vmem:[%s956 + $0x20] sm:$0x1]
        %v966 = vld [vmem:[%s956 + $0x24] sm:$0xf]
        %v967 = vld [vmem:[%s956 + $0x28] sm:$0xf]
        %v968 = vld [vmem:[%s956 + $0x2c] sm:$0x1]
        %v969 = vld [vmem:[%s956 + $0x30] sm:$0xf]
        %v970 = vld [vmem:[%s956 + $0x34] sm:$0xf]
        %v971 = vld [vmem:[%s956 + $0x38] sm:$0x1]
        %v972 = vld [vmem:[%s956 + $0x3c] sm:$0xf]
        %v973 = vld [vmem:[%s956 + $0x40] sm:$0xf]
        %v974 = vld [vmem:[%s956 + $0x44] sm:$0x1]
        %v975 = vld [vmem:[%s956 + $0x48] sm:$0xf]
        %v976 = vld [vmem:[%s956 + $0x4c] sm:$0xf]
        %v977 = vld [vmem:[%s956 + $0x50] sm:$0x1]
        %v978 = vld [vmem:[%s956 + $0x54] sm:$0xf]
        %v979 = vld [vmem:[%s956 + $0x58] sm:$0xf]
        %v980 = vld [vmem:[%s956 + $0x5c] sm:$0x1]
        %v981 = vunpack.c.l.bf16 %v957
        %v982 = vunpack.c.l.bf16 %v958
        %v983 = vunpack.c.l.bf16 %v959
        %v984 = vunpack.c.l.bf16 %v960
        %v985 = vunpack.c.l.bf16 %v961
        %v986 = vunpack.c.l.bf16 %v962
        %v987 = vunpack.c.l.bf16 %v963
        %v988 = vunpack.c.l.bf16 %v964
        %v989 = vunpack.c.l.bf16 %v965
        %v990 = vunpack.c.l.bf16 %v966
        %v991 = vunpack.c.l.bf16 %v967
        %v992 = vunpack.c.l.bf16 %v968
        %v993 = vunpack.c.l.bf16 %v969
        %v994 = vunpack.c.l.bf16 %v970
        %v995 = vunpack.c.l.bf16 %v971
        %v996 = vunpack.c.l.bf16 %v972
        %v997 = vunpack.c.l.bf16 %v973
        %v998 = vunpack.c.l.bf16 %v974
        %v999 = vunpack.c.l.bf16 %v975
        %v1000 = vunpack.c.l.bf16 %v976
        %v1001 = vunpack.c.l.bf16 %v977
        %v1002 = vunpack.c.l.bf16 %v978
        %v1003 = vunpack.c.l.bf16 %v979
        %v1004 = vunpack.c.l.bf16 %v980
        %v1005 = vpack.c.bf16 %v982, %v981
        %v1006 = vpack.c.bf16 %v985, %v984
        %v1007 = vpack.c.bf16 %v988, %v987
        %v1008 = vpack.c.bf16 %v991, %v990
        %v1009 = vpack.c.bf16 %v994, %v993
        %v1010 = vpack.c.bf16 %v997, %v996
        %v1011 = vpack.c.bf16 %v1000, %v999
        %v1012 = vpack.c.bf16 %v1003, %v1002
        %s1013 = scalar_lea.vmem %s1, 192
        %v1014 = vld [vmem:[%s1013] sm:$0xf]
        %v1015 = vld [vmem:[%s1013 + $0x4] sm:$0xf]
        %v1016 = vld [vmem:[%s1013 + $0x8] sm:$0xf]
        %v1017 = vld [vmem:[%s1013 + $0xc] sm:$0xf]
        %v1018 = vld [vmem:[%s1013 + $0x10] sm:$0xf]
        %v1019 = vld [vmem:[%s1013 + $0x14] sm:$0xf]
        %v1020 = vld [vmem:[%s1013 + $0x18] sm:$0xf]
        %v1021 = vld [vmem:[%s1013 + $0x1c] sm:$0xf]
        %v1022 = vld [vmem:[%s1013 + $0x20] sm:$0xf]
        %v1023 = vld [vmem:[%s1013 + $0x24] sm:$0xf]
        %v1024 = vld [vmem:[%s1013 + $0x28] sm:$0xf]
        %v1025 = vld [vmem:[%s1013 + $0x2c] sm:$0xf]
        %v1026 = vld [vmem:[%s1013 + $0x30] sm:$0xf]
        %v1027 = vld [vmem:[%s1013 + $0x34] sm:$0xf]
        %v1028 = vld [vmem:[%s1013 + $0x38] sm:$0xf]
        %v1029 = vld [vmem:[%s1013 + $0x3c] sm:$0xf]
        %v1046 = vunpack.c.l.b16 %v1014
        %v1047 = vunpack.c.l.b16 %v1015
        %v1048 = vunpack.c.l.b16 %v1016
        %v1049 = vunpack.c.l.b16 %v1017
        %v1050 = vunpack.c.l.b16 %v1018
        %v1051 = vunpack.c.l.b16 %v1019
        %v1052 = vunpack.c.l.b16 %v1020
        %v1053 = vunpack.c.l.b16 %v1021
        %v1054 = vunpack.c.l.b16 %v1022
        %v1055 = vunpack.c.l.b16 %v1023
        %v1056 = vunpack.c.l.b16 %v1024
        %v1057 = vunpack.c.l.b16 %v1025
        %v1058 = vunpack.c.l.b16 %v1026
        %v1059 = vunpack.c.l.b16 %v1027
        %v1060 = vunpack.c.l.b16 %v1028
        %v1061 = vunpack.c.l.b16 %v1029
        %v1062 = vpack.c.b16 %v1047, %v1046
        %v1063 = vpack.c.b16 %v1049, %v1048
        %v1064 = vpack.c.b16 %v1051, %v1050
        %v1065 = vpack.c.b16 %v1053, %v1052
        %v1066 = vpack.c.b16 %v1055, %v1054
        %v1067 = vpack.c.b16 %v1057, %v1056
        %v1068 = vpack.c.b16 %v1059, %v1058
        %v1069 = vpack.c.b16 %v1061, %v1060
        %1078 = vmatprep.subr.bf16.mxu0 0
        %1079 = vmatpush1.bf16.msra.mxu0 %v1062
        %1080 = vmatprep.subr.bf16.mxu0 0
        %1081 = vmatpush1.bf16.msra.mxu0 %v1063
        %1082 = vmatprep.subr.bf16.mxu0 0
        %1083 = vmatpush1.bf16.msra.mxu0 %v1064
        %1084 = vmatprep.subr.bf16.mxu0 0
        %1085 = vmatpush1.bf16.msra.mxu0 %v1065
        %1086 = vmatprep.subr.bf16.mxu0 0
        %1087 = vmatpush1.bf16.msra.mxu0 %v1066
        %1088 = vmatprep.subr.bf16.mxu0 0
        %1089 = vmatpush1.bf16.msra.mxu0 %v1067
        %1090 = vmatprep.subr.bf16.mxu0 0
        %1091 = vmatpush1.bf16.msra.mxu0 %v1068
        %1092 = vmatprep.subr.bf16.mxu0 0
        %1093 = vmatpush1.bf16.msra.mxu0 %v1069
        %1094 = vmatprep.subr.bf16.mxu0 0
        %1095 = vmatpush1.bf16.msra.mxu0 0
        %1096 = vmatprep.subr.bf16.mxu0 0
        %1097 = vmatpush1.bf16.msra.mxu0 0
        %1098 = vmatprep.subr.bf16.mxu0 0
        %1099 = vmatpush1.bf16.msra.mxu0 0
        %1100 = vmatprep.subr.bf16.mxu0 0
        %1101 = vmatpush1.bf16.msra.mxu0 0
        %1102 = vmatprep.subr.bf16.mxu0 0
        %1103 = vmatpush1.bf16.msra.mxu0 0
        %1104 = vmatprep.subr.bf16.mxu0 0
        %1105 = vmatpush1.bf16.msra.mxu0 0
        %1106 = vmatprep.subr.bf16.mxu0 0
        %1107 = vmatpush1.bf16.msra.mxu0 0
        %1108 = vmatprep.subr.bf16.mxu0 0
        %1109 = vmatpush1.bf16.msra.mxu0 0
        %1110 = vmatprep.mubr.bf16.mxu0 0
        %1111 = vmatmul.mubr.bf16.gmra.mrb[0].mxu0 %v1005
        %v1112 = vpop.f32.mrb[0].mxu0
        %v1113 = vadd.f32 0.0, %v1112
        %v1114 = vpop.f32.mrb[0].mxu0
        %v1115 = vpop.f32.mrb[0].mxu0
        %v1116 = vadd.f32 0.0, %v1115
        %v1117 = vpop.f32.mrb[0].mxu0
        %1118 = vmatprep.mubr.bf16.mxu0 0
        %1119 = vmatmul.mubr.bf16.gmra.mrb[0].mxu0 %v1006
        %v1120 = vpop.f32.mrb[0].mxu0
        %v1121 = vadd.f32 0.0, %v1120
        %v1122 = vpop.f32.mrb[0].mxu0
        %v1123 = vpop.f32.mrb[0].mxu0
        %v1124 = vadd.f32 0.0, %v1123
        %v1125 = vpop.f32.mrb[0].mxu0
        %1126 = vmatprep.mubr.bf16.mxu0 0
        %1127 = vmatmul.mubr.bf16.gmra.mrb[0].mxu0 %v1007
        %v1128 = vpop.f32.mrb[0].mxu0
        %v1129 = vadd.f32 0.0, %v1128
        %v1130 = vpop.f32.mrb[0].mxu0
        %v1131 = vpop.f32.mrb[0].mxu0
        %v1132 = vadd.f32 0.0, %v1131
        %v1133 = vpop.f32.mrb[0].mxu0
        %1134 = vmatprep.mubr.bf16.mxu0 0
        %1135 = vmatmul.mubr.bf16.gmra.mrb[0].mxu0 %v1008
        %v1136 = vpop.f32.mrb[0].mxu0
        %v1137 = vadd.f32 0.0, %v1136
        %v1138 = vpop.f32.mrb[0].mxu0
        %v1139 = vpop.f32.mrb[0].mxu0
        %v1140 = vadd.f32 0.0, %v1139
        %v1141 = vpop.f32.mrb[0].mxu0
        %1142 = vmatprep.mubr.bf16.mxu0 0
        %1143 = vmatmul.mubr.bf16.gmra.mrb[0].mxu0 %v1009
        %v1144 = vpop.f32.mrb[0].mxu0
        %v1145 = vadd.f32 0.0, %v1144
        %v1146 = vpop.f32.mrb[0].mxu0
        %v1147 = vpop.f32.mrb[0].mxu0
        %v1148 = vadd.f32 0.0, %v1147
        %v1149 = vpop.f32.mrb[0].mxu0
        %1150 = vmatprep.mubr.bf16.mxu0 0
        %1151 = vmatmul.mubr.bf16.gmra.mrb[0].mxu0 %v1010
        %v1152 = vpop.f32.mrb[0].mxu0
        %v1153 = vadd.f32 0.0, %v1152
        %v1154 = vpop.f32.mrb[0].mxu0
        %v1155 = vpop.f32.mrb[0].mxu0
        %v1156 = vadd.f32 0.0, %v1155
        %v1157 = vpop.f32.mrb[0].mxu0
        %1158 = vmatprep.mubr.bf16.mxu0 0
        %1159 = vmatmul.mubr.bf16.gmra.mrb[0].mxu0 %v1011
        %v1160 = vpop.f32.mrb[0].mxu0
        %v1161 = vadd.f32 0.0, %v1160
        %v1162 = vpop.f32.mrb[0].mxu0
        %v1163 = vpop.f32.mrb[0].mxu0
        %v1164 = vadd.f32 0.0, %v1163
        %v1165 = vpop.f32.mrb[0].mxu0
        %1166 = vmatprep.mubr.bf16.mxu0 0
        %1167 = vmatmul.mubr.bf16.gmra.mrb[0].mxu0 %v1012
        %v1168 = vpop.f32.mrb[0].mxu0
        %v1169 = vadd.f32 0.0, %v1168
        %v1170 = vpop.f32.mrb[0].mxu0
        %v1171 = vpop.f32.mrb[0].mxu0
        %v1172 = vadd.f32 0.0, %v1171
        %v1173 = vpop.f32.mrb[0].mxu0
        %1174 = vdwg.mxu0
        %v1175 = vadd.f32 %v940, %v1113
        %v1176 = vadd.f32 %v941, %v1116
        %v1177 = vadd.f32 %v942, %v1121
        %v1178 = vadd.f32 %v943, %v1124
        %v1179 = vadd.f32 %v944, %v1129
        %v1180 = vadd.f32 %v945, %v1132
        %v1181 = vadd.f32 %v946, %v1137
        %v1182 = vadd.f32 %v947, %v1140
        %v1183 = vadd.f32 %v948, %v1145
        %v1184 = vadd.f32 %v949, %v1148
        %v1185 = vadd.f32 %v950, %v1153
        %v1186 = vadd.f32 %v951, %v1156
        %v1187 = vadd.f32 %v952, %v1161
        %v1188 = vadd.f32 %v953, %v1164
        %v1189 = vadd.f32 %v954, %v1169
        %v1190 = vadd.f32 %v955, %v1172
        %v1215 = vrot.slane %v981, 1
        %v1216 = vrot.slane %v982, 1
        %v1217 = vsel %vm341, %v1215, %v1216
        %v1218 = vrot.slane %v983, 1
        %v1219 = vsel %vm341, %v1216, %v1218
        %v1220 = vrot.slane %v984, 1
        %v1221 = vrot.slane %v985, 1
        %v1222 = vsel %vm341, %v1220, %v1221
        %v1223 = vrot.slane %v986, 1
        %v1224 = vsel %vm341, %v1221, %v1223
        %v1225 = vrot.slane %v987, 1
        %v1226 = vrot.slane %v988, 1
        %v1227 = vsel %vm341, %v1225, %v1226
        %v1228 = vrot.slane %v989, 1
        %v1229 = vsel %vm341, %v1226, %v1228
        %v1230 = vrot.slane %v990, 1
        %v1231 = vrot.slane %v991, 1
        %v1232 = vsel %vm341, %v1230, %v1231
        %v1233 = vrot.slane %v992, 1
        %v1234 = vsel %vm341, %v1231, %v1233
        %v1235 = vrot.slane %v993, 1
        %v1236 = vrot.slane %v994, 1
        %v1237 = vsel %vm341, %v1235, %v1236
        %v1238 = vrot.slane %v995, 1
        %v1239 = vsel %vm341, %v1236, %v1238
        %v1240 = vrot.slane %v996, 1
        %v1241 = vrot.slane %v997, 1
        %v1242 = vsel %vm341, %v1240, %v1241
        %v1243 = vrot.slane %v998, 1
        %v1244 = vsel %vm341, %v1241, %v1243
        %v1245 = vrot.slane %v999, 1
        %v1246 = vrot.slane %v1000, 1
        %v1247 = vsel %vm341, %v1245, %v1246
        %v1248 = vrot.slane %v1001, 1
        %v1249 = vsel %vm341, %v1246, %v1248
        %v1250 = vrot.slane %v1002, 1
        %v1251 = vrot.slane %v1003, 1
        %v1252 = vsel %vm341, %v1250, %v1251
        %v1253 = vrot.slane %v1004, 1
        %v1254 = vsel %vm341, %v1251, %v1253
        %v1271 = vpack.c.bf16 %v1219, %v1217
        %v1272 = vpack.c.bf16 %v1224, %v1222
        %v1273 = vpack.c.bf16 %v1229, %v1227
        %v1274 = vpack.c.bf16 %v1234, %v1232
        %v1275 = vpack.c.bf16 %v1239, %v1237
        %v1276 = vpack.c.bf16 %v1244, %v1242
        %v1277 = vpack.c.bf16 %v1249, %v1247
        %v1278 = vpack.c.bf16 %v1254, %v1252
        %s1279 = scalar_lea.vmem %s1, 256
        %v1280 = vld [vmem:[%s1279] sm:$0xf]
        %v1281 = vld [vmem:[%s1279 + $0x4] sm:$0xf]
        %v1282 = vld [vmem:[%s1279 + $0x8] sm:$0xf]
        %v1283 = vld [vmem:[%s1279 + $0xc] sm:$0xf]
        %v1284 = vld [vmem:[%s1279 + $0x10] sm:$0xf]
        %v1285 = vld [vmem:[%s1279 + $0x14] sm:$0xf]
        %v1286 = vld [vmem:[%s1279 + $0x18] sm:$0xf]
        %v1287 = vld [vmem:[%s1279 + $0x1c] sm:$0xf]
        %v1288 = vld [vmem:[%s1279 + $0x20] sm:$0xf]
        %v1289 = vld [vmem:[%s1279 + $0x24] sm:$0xf]
        %v1290 = vld [vmem:[%s1279 + $0x28] sm:$0xf]
        %v1291 = vld [vmem:[%s1279 + $0x2c] sm:$0xf]
        %v1292 = vld [vmem:[%s1279 + $0x30] sm:$0xf]
        %v1293 = vld [vmem:[%s1279 + $0x34] sm:$0xf]
        %v1294 = vld [vmem:[%s1279 + $0x38] sm:$0xf]
        %v1295 = vld [vmem:[%s1279 + $0x3c] sm:$0xf]
        %v1312 = vunpack.c.l.b16 %v1280
        %v1313 = vunpack.c.l.b16 %v1281
        %v1314 = vunpack.c.l.b16 %v1282
        %v1315 = vunpack.c.l.b16 %v1283
        %v1316 = vunpack.c.l.b16 %v1284
        %v1317 = vunpack.c.l.b16 %v1285
        %v1318 = vunpack.c.l.b16 %v1286
        %v1319 = vunpack.c.l.b16 %v1287
        %v1320 = vunpack.c.l.b16 %v1288
        %v1321 = vunpack.c.l.b16 %v1289
        %v1322 = vunpack.c.l.b16 %v1290
        %v1323 = vunpack.c.l.b16 %v1291
        %v1324 = vunpack.c.l.b16 %v1292
        %v1325 = vunpack.c.l.b16 %v1293
        %v1326 = vunpack.c.l.b16 %v1294
        %v1327 = vunpack.c.l.b16 %v1295
        %v1328 = vpack.c.b16 %v1313, %v1312
        %v1329 = vpack.c.b16 %v1315, %v1314
        %v1330 = vpack.c.b16 %v1317, %v1316
        %v1331 = vpack.c.b16 %v1319, %v1318
        %v1332 = vpack.c.b16 %v1321, %v1320
        %v1333 = vpack.c.b16 %v1323, %v1322
        %v1334 = vpack.c.b16 %v1325, %v1324
        %v1335 = vpack.c.b16 %v1327, %v1326
        %1344 = vmatprep.subr.bf16.mxu0 0
        %1345 = vmatpush1.bf16.msra.mxu0 %v1328
        %1346 = vmatprep.subr.bf16.mxu0 0
        %1347 = vmatpush1.bf16.msra.mxu0 %v1329
        %1348 = vmatprep.subr.bf16.mxu0 0
        %1349 = vmatpush1.bf16.msra.mxu0 %v1330
        %1350 = vmatprep.subr.bf16.mxu0 0
        %1351 = vmatpush1.bf16.msra.mxu0 %v1331
        %1352 = vmatprep.subr.bf16.mxu0 0
        %1353 = vmatpush1.bf16.msra.mxu0 %v1332
        %1354 = vmatprep.subr.bf16.mxu0 0
        %1355 = vmatpush1.bf16.msra.mxu0 %v1333
        %1356 = vmatprep.subr.bf16.mxu0 0
        %1357 = vmatpush1.bf16.msra.mxu0 %v1334
        %1358 = vmatprep.subr.bf16.mxu0 0
        %1359 = vmatpush1.bf16.msra.mxu0 %v1335
        %1360 = vmatprep.subr.bf16.mxu0 0
        %1361 = vmatpush1.bf16.msra.mxu0 0
        %1362 = vmatprep.subr.bf16.mxu0 0
        %1363 = vmatpush1.bf16.msra.mxu0 0
        %1364 = vmatprep.subr.bf16.mxu0 0
        %1365 = vmatpush1.bf16.msra.mxu0 0
        %1366 = vmatprep.subr.bf16.mxu0 0
        %1367 = vmatpush1.bf16.msra.mxu0 0
        %1368 = vmatprep.subr.bf16.mxu0 0
        %1369 = vmatpush1.bf16.msra.mxu0 0
        %1370 = vmatprep.subr.bf16.mxu0 0
        %1371 = vmatpush1.bf16.msra.mxu0 0
        %1372 = vmatprep.subr.bf16.mxu0 0
        %1373 = vmatpush1.bf16.msra.mxu0 0
        %1374 = vmatprep.subr.bf16.mxu0 0
        %1375 = vmatpush1.bf16.msra.mxu0 0
        %1376 = vmatprep.mubr.bf16.mxu0 0
        %1377 = vmatmul.mubr.bf16.gmra.mrb[0].mxu0 %v1271
        %v1378 = vpop.f32.mrb[0].mxu0
        %v1379 = vadd.f32 0.0, %v1378
        %v1380 = vpop.f32.mrb[0].mxu0
        %v1381 = vpop.f32.mrb[0].mxu0
        %v1382 = vadd.f32 0.0, %v1381
        %v1383 = vpop.f32.mrb[0].mxu0
        %1384 = vmatprep.mubr.bf16.mxu0 0
        %1385 = vmatmul.mubr.bf16.gmra.mrb[0].mxu0 %v1272
        %v1386 = vpop.f32.mrb[0].mxu0
        %v1387 = vadd.f32 0.0, %v1386
        %v1388 = vpop.f32.mrb[0].mxu0
        %v1389 = vpop.f32.mrb[0].mxu0
        %v1390 = vadd.f32 0.0, %v1389
        %v1391 = vpop.f32.mrb[0].mxu0
        %1392 = vmatprep.mubr.bf16.mxu0 0
        %1393 = vmatmul.mubr.bf16.gmra.mrb[0].mxu0 %v1273
        %v1394 = vpop.f32.mrb[0].mxu0
        %v1395 = vadd.f32 0.0, %v1394
        %v1396 = vpop.f32.mrb[0].mxu0
        %v1397 = vpop.f32.mrb[0].mxu0
        %v1398 = vadd.f32 0.0, %v1397
        %v1399 = vpop.f32.mrb[0].mxu0
        %1400 = vmatprep.mubr.bf16.mxu0 0
        %1401 = vmatmul.mubr.bf16.gmra.mrb[0].mxu0 %v1274
        %v1402 = vpop.f32.mrb[0].mxu0
        %v1403 = vadd.f32 0.0, %v1402
        %v1404 = vpop.f32.mrb[0].mxu0
        %v1405 = vpop.f32.mrb[0].mxu0
        %v1406 = vadd.f32 0.0, %v1405
        %v1407 = vpop.f32.mrb[0].mxu0
        %1408 = vmatprep.mubr.bf16.mxu0 0
        %1409 = vmatmul.mubr.bf16.gmra.mrb[0].mxu0 %v1275
        %v1410 = vpop.f32.mrb[0].mxu0
        %v1411 = vadd.f32 0.0, %v1410
        %v1412 = vpop.f32.mrb[0].mxu0
        %v1413 = vpop.f32.mrb[0].mxu0
        %v1414 = vadd.f32 0.0, %v1413
        %v1415 = vpop.f32.mrb[0].mxu0
        %1416 = vmatprep.mubr.bf16.mxu0 0
        %1417 = vmatmul.mubr.bf16.gmra.mrb[0].mxu0 %v1276
        %v1418 = vpop.f32.mrb[0].mxu0
        %v1419 = vadd.f32 0.0, %v1418
        %v1420 = vpop.f32.mrb[0].mxu0
        %v1421 = vpop.f32.mrb[0].mxu0
        %v1422 = vadd.f32 0.0, %v1421
        %v1423 = vpop.f32.mrb[0].mxu0
        %1424 = vmatprep.mubr.bf16.mxu0 0
        %1425 = vmatmul.mubr.bf16.gmra.mrb[0].mxu0 %v1277
        %v1426 = vpop.f32.mrb[0].mxu0
        %v1427 = vadd.f32 0.0, %v1426
        %v1428 = vpop.f32.mrb[0].mxu0
        %v1429 = vpop.f32.mrb[0].mxu0
        %v1430 = vadd.f32 0.0, %v1429
        %v1431 = vpop.f32.mrb[0].mxu0
        %1432 = vmatprep.mubr.bf16.mxu0 0
        %1433 = vmatmul.mubr.bf16.gmra.mrb[0].mxu0 %v1278
        %v1434 = vpop.f32.mrb[0].mxu0
        %v1435 = vadd.f32 0.0, %v1434
        %v1436 = vpop.f32.mrb[0].mxu0
        %v1437 = vpop.f32.mrb[0].mxu0
        %v1438 = vadd.f32 0.0, %v1437
        %v1439 = vpop.f32.mrb[0].mxu0
        %1440 = vdwg.mxu0
        %v1441 = vadd.f32 %v1175, %v1379
        %v1442 = vadd.f32 %v1176, %v1382
        %v1443 = vadd.f32 %v1177, %v1387
        %v1444 = vadd.f32 %v1178, %v1390
        %v1445 = vadd.f32 %v1179, %v1395
        %v1446 = vadd.f32 %v1180, %v1398
        %v1447 = vadd.f32 %v1181, %v1403
        %v1448 = vadd.f32 %v1182, %v1406
        %v1449 = vadd.f32 %v1183, %v1411
        %v1450 = vadd.f32 %v1184, %v1414
        %v1451 = vadd.f32 %v1185, %v1419
        %v1452 = vadd.f32 %v1186, %v1422
        %v1453 = vadd.f32 %v1187, %v1427
        %v1454 = vadd.f32 %v1188, %v1430
        %v1455 = vadd.f32 %v1189, %v1435
        %v1456 = vadd.f32 %v1190, %v1438
        %v1457 = vrot.slane %v981, 2
        %v1458 = vrot.slane %v982, 2
        %v1459 = vsel %vm713, %v1457, %v1458
        %v1460 = vrot.slane %v983, 2
        %v1461 = vsel %vm713, %v1458, %v1460
        %v1462 = vrot.slane %v984, 2
        %v1463 = vrot.slane %v985, 2
        %v1464 = vsel %vm713, %v1462, %v1463
        %v1465 = vrot.slane %v986, 2
        %v1466 = vsel %vm713, %v1463, %v1465
        %v1467 = vrot.slane %v987, 2
        %v1468 = vrot.slane %v988, 2
        %v1469 = vsel %vm713, %v1467, %v1468
        %v1470 = vrot.slane %v989, 2
        %v1471 = vsel %vm713, %v1468, %v1470
        %v1472 = vrot.slane %v990, 2
        %v1473 = vrot.slane %v991, 2
        %v1474 = vsel %vm713, %v1472, %v1473
        %v1475 = vrot.slane %v992, 2
        %v1476 = vsel %vm713, %v1473, %v1475
        %v1477 = vrot.slane %v993, 2
        %v1478 = vrot.slane %v994, 2
        %v1479 = vsel %vm713, %v1477, %v1478
        %v1480 = vrot.slane %v995, 2
        %v1481 = vsel %vm713, %v1478, %v1480
        %v1482 = vrot.slane %v996, 2
        %v1483 = vrot.slane %v997, 2
        %v1484 = vsel %vm713, %v1482, %v1483
        %v1485 = vrot.slane %v998, 2
        %v1486 = vsel %vm713, %v1483, %v1485
        %v1487 = vrot.slane %v999, 2
        %v1488 = vrot.slane %v1000, 2
        %v1489 = vsel %vm713, %v1487, %v1488
        %v1490 = vrot.slane %v1001, 2
        %v1491 = vsel %vm713, %v1488, %v1490
        %v1492 = vrot.slane %v1002, 2
        %v1493 = vrot.slane %v1003, 2
        %v1494 = vsel %vm713, %v1492, %v1493
        %v1495 = vrot.slane %v1004, 2
        %v1496 = vsel %vm713, %v1493, %v1495
        %v1513 = vpack.c.bf16 %v1461, %v1459
        %v1514 = vpack.c.bf16 %v1466, %v1464
        %v1515 = vpack.c.bf16 %v1471, %v1469
        %v1516 = vpack.c.bf16 %v1476, %v1474
        %v1517 = vpack.c.bf16 %v1481, %v1479
        %v1518 = vpack.c.bf16 %v1486, %v1484
        %v1519 = vpack.c.bf16 %v1491, %v1489
        %v1520 = vpack.c.bf16 %v1496, %v1494
        %s1521 = scalar_lea.vmem %s1, 320
        %v1522 = vld [vmem:[%s1521] sm:$0xf]
        %v1523 = vld [vmem:[%s1521 + $0x4] sm:$0xf]
        %v1524 = vld [vmem:[%s1521 + $0x8] sm:$0xf]
        %v1525 = vld [vmem:[%s1521 + $0xc] sm:$0xf]
        %v1526 = vld [vmem:[%s1521 + $0x10] sm:$0xf]
        %v1527 = vld [vmem:[%s1521 + $0x14] sm:$0xf]
        %v1528 = vld [vmem:[%s1521 + $0x18] sm:$0xf]
        %v1529 = vld [vmem:[%s1521 + $0x1c] sm:$0xf]
        %v1530 = vld [vmem:[%s1521 + $0x20] sm:$0xf]
        %v1531 = vld [vmem:[%s1521 + $0x24] sm:$0xf]
        %v1532 = vld [vmem:[%s1521 + $0x28] sm:$0xf]
        %v1533 = vld [vmem:[%s1521 + $0x2c] sm:$0xf]
        %v1534 = vld [vmem:[%s1521 + $0x30] sm:$0xf]
        %v1535 = vld [vmem:[%s1521 + $0x34] sm:$0xf]
        %v1536 = vld [vmem:[%s1521 + $0x38] sm:$0xf]
        %v1537 = vld [vmem:[%s1521 + $0x3c] sm:$0xf]
        %v1554 = vunpack.c.l.b16 %v1522
        %v1555 = vunpack.c.l.b16 %v1523
        %v1556 = vunpack.c.l.b16 %v1524
        %v1557 = vunpack.c.l.b16 %v1525
        %v1558 = vunpack.c.l.b16 %v1526
        %v1559 = vunpack.c.l.b16 %v1527
        %v1560 = vunpack.c.l.b16 %v1528
        %v1561 = vunpack.c.l.b16 %v1529
        %v1562 = vunpack.c.l.b16 %v1530
        %v1563 = vunpack.c.l.b16 %v1531
        %v1564 = vunpack.c.l.b16 %v1532
        %v1565 = vunpack.c.l.b16 %v1533
        %v1566 = vunpack.c.l.b16 %v1534
        %v1567 = vunpack.c.l.b16 %v1535
        %v1568 = vunpack.c.l.b16 %v1536
        %v1569 = vunpack.c.l.b16 %v1537
        %v1570 = vpack.c.b16 %v1555, %v1554
        %v1571 = vpack.c.b16 %v1557, %v1556
        %v1572 = vpack.c.b16 %v1559, %v1558
        %v1573 = vpack.c.b16 %v1561, %v1560
        %v1574 = vpack.c.b16 %v1563, %v1562
        %v1575 = vpack.c.b16 %v1565, %v1564
        %v1576 = vpack.c.b16 %v1567, %v1566
        %v1577 = vpack.c.b16 %v1569, %v1568
        %1586 = vmatprep.subr.bf16.mxu0 0
        %1587 = vmatpush1.bf16.msra.mxu0 %v1570
        %1588 = vmatprep.subr.bf16.mxu0 0
        %1589 = vmatpush1.bf16.msra.mxu0 %v1571
        %1590 = vmatprep.subr.bf16.mxu0 0
        %1591 = vmatpush1.bf16.msra.mxu0 %v1572
        %1592 = vmatprep.subr.bf16.mxu0 0
        %1593 = vmatpush1.bf16.msra.mxu0 %v1573
        %1594 = vmatprep.subr.bf16.mxu0 0
        %1595 = vmatpush1.bf16.msra.mxu0 %v1574
        %1596 = vmatprep.subr.bf16.mxu0 0
        %1597 = vmatpush1.bf16.msra.mxu0 %v1575
        %1598 = vmatprep.subr.bf16.mxu0 0
        %1599 = vmatpush1.bf16.msra.mxu0 %v1576
        %1600 = vmatprep.subr.bf16.mxu0 0
        %1601 = vmatpush1.bf16.msra.mxu0 %v1577
        %1602 = vmatprep.subr.bf16.mxu0 0
        %1603 = vmatpush1.bf16.msra.mxu0 0
        %1604 = vmatprep.subr.bf16.mxu0 0
        %1605 = vmatpush1.bf16.msra.mxu0 0
        %1606 = vmatprep.subr.bf16.mxu0 0
        %1607 = vmatpush1.bf16.msra.mxu0 0
        %1608 = vmatprep.subr.bf16.mxu0 0
        %1609 = vmatpush1.bf16.msra.mxu0 0
        %1610 = vmatprep.subr.bf16.mxu0 0
        %1611 = vmatpush1.bf16.msra.mxu0 0
        %1612 = vmatprep.subr.bf16.mxu0 0
        %1613 = vmatpush1.bf16.msra.mxu0 0
        %1614 = vmatprep.subr.bf16.mxu0 0
        %1615 = vmatpush1.bf16.msra.mxu0 0
        %1616 = vmatprep.subr.bf16.mxu0 0
        %1617 = vmatpush1.bf16.msra.mxu0 0
        %1618 = vmatprep.mubr.bf16.mxu0 0
        %1619 = vmatmul.mubr.bf16.gmra.mrb[0].mxu0 %v1513
        %v1620 = vpop.f32.mrb[0].mxu0
        %v1621 = vadd.f32 0.0, %v1620
        %v1622 = vpop.f32.mrb[0].mxu0
        %v1623 = vpop.f32.mrb[0].mxu0
        %v1624 = vadd.f32 0.0, %v1623
        %v1625 = vpop.f32.mrb[0].mxu0
        %1626 = vmatprep.mubr.bf16.mxu0 0
        %1627 = vmatmul.mubr.bf16.gmra.mrb[0].mxu0 %v1514
        %v1628 = vpop.f32.mrb[0].mxu0
        %v1629 = vadd.f32 0.0, %v1628
        %v1630 = vpop.f32.mrb[0].mxu0
        %v1631 = vpop.f32.mrb[0].mxu0
        %v1632 = vadd.f32 0.0, %v1631
        %v1633 = vpop.f32.mrb[0].mxu0
        %1634 = vmatprep.mubr.bf16.mxu0 0
        %1635 = vmatmul.mubr.bf16.gmra.mrb[0].mxu0 %v1515
        %v1636 = vpop.f32.mrb[0].mxu0
        %v1637 = vadd.f32 0.0, %v1636
        %v1638 = vpop.f32.mrb[0].mxu0
        %v1639 = vpop.f32.mrb[0].mxu0
        %v1640 = vadd.f32 0.0, %v1639
        %v1641 = vpop.f32.mrb[0].mxu0
        %1642 = vmatprep.mubr.bf16.mxu0 0
        %1643 = vmatmul.mubr.bf16.gmra.mrb[0].mxu0 %v1516
        %v1644 = vpop.f32.mrb[0].mxu0
        %v1645 = vadd.f32 0.0, %v1644
        %v1646 = vpop.f32.mrb[0].mxu0
        %v1647 = vpop.f32.mrb[0].mxu0
        %v1648 = vadd.f32 0.0, %v1647
        %v1649 = vpop.f32.mrb[0].mxu0
        %1650 = vmatprep.mubr.bf16.mxu0 0
        %1651 = vmatmul.mubr.bf16.gmra.mrb[0].mxu0 %v1517
        %v1652 = vpop.f32.mrb[0].mxu0
        %v1653 = vadd.f32 0.0, %v1652
        %v1654 = vpop.f32.mrb[0].mxu0
        %v1655 = vpop.f32.mrb[0].mxu0
        %v1656 = vadd.f32 0.0, %v1655
        %v1657 = vpop.f32.mrb[0].mxu0
        %1658 = vmatprep.mubr.bf16.mxu0 0
        %1659 = vmatmul.mubr.bf16.gmra.mrb[0].mxu0 %v1518
        %v1660 = vpop.f32.mrb[0].mxu0
        %v1661 = vadd.f32 0.0, %v1660
        %v1662 = vpop.f32.mrb[0].mxu0
        %v1663 = vpop.f32.mrb[0].mxu0
        %v1664 = vadd.f32 0.0, %v1663
        %v1665 = vpop.f32.mrb[0].mxu0
        %1666 = vmatprep.mubr.bf16.mxu0 0
        %1667 = vmatmul.mubr.bf16.gmra.mrb[0].mxu0 %v1519
        %v1668 = vpop.f32.mrb[0].mxu0
        %v1669 = vadd.f32 0.0, %v1668
        %v1670 = vpop.f32.mrb[0].mxu0
        %v1671 = vpop.f32.mrb[0].mxu0
        %v1672 = vadd.f32 0.0, %v1671
        %v1673 = vpop.f32.mrb[0].mxu0
        %1674 = vmatprep.mubr.bf16.mxu0 0
        %1675 = vmatmul.mubr.bf16.gmra.mrb[0].mxu0 %v1520
        %v1676 = vpop.f32.mrb[0].mxu0
        %v1677 = vadd.f32 0.0, %v1676
        %v1678 = vpop.f32.mrb[0].mxu0
        %v1679 = vpop.f32.mrb[0].mxu0
        %v1680 = vadd.f32 0.0, %v1679
        %v1681 = vpop.f32.mrb[0].mxu0
        %1682 = vdwg.mxu0
        %v1683 = vadd.f32 %v1441, %v1621
        %v1684 = vadd.f32 %v1442, %v1624
        %v1685 = vadd.f32 %v1443, %v1629
        %v1686 = vadd.f32 %v1444, %v1632
        %v1687 = vadd.f32 %v1445, %v1637
        %v1688 = vadd.f32 %v1446, %v1640
        %v1689 = vadd.f32 %v1447, %v1645
        %v1690 = vadd.f32 %v1448, %v1648
        %v1691 = vadd.f32 %v1449, %v1653
        %v1692 = vadd.f32 %v1450, %v1656
        %v1693 = vadd.f32 %v1451, %v1661
        %v1694 = vadd.f32 %v1452, %v1664
        %v1695 = vadd.f32 %v1453, %v1669
        %v1696 = vadd.f32 %v1454, %v1672
        %v1697 = vadd.f32 %v1455, %v1677
        %v1698 = vadd.f32 %v1456, %v1680
        %s1699 = scalar_lea.vmem %s239, 24
        %v1700 = vld [vmem:[%s1699] sm:$0xf]
        %v1701 = vld [vmem:[%s1699 + $0x4] sm:$0xf]
        %v1702 = vld [vmem:[%s1699 + $0x8] sm:$0x1]
        %v1703 = vld [vmem:[%s1699 + $0xc] sm:$0xf]
        %v1704 = vld [vmem:[%s1699 + $0x10] sm:$0xf]
        %v1705 = vld [vmem:[%s1699 + $0x14] sm:$0x1]
        %v1706 = vld [vmem:[%s1699 + $0x18] sm:$0xf]
        %v1707 = vld [vmem:[%s1699 + $0x1c] sm:$0xf]
        %v1708 = vld [vmem:[%s1699 + $0x20] sm:$0x1]
        %v1709 = vld [vmem:[%s1699 + $0x24] sm:$0xf]
        %v1710 = vld [vmem:[%s1699 + $0x28] sm:$0xf]
        %v1711 = vld [vmem:[%s1699 + $0x2c] sm:$0x1]
        %v1712 = vld [vmem:[%s1699 + $0x30] sm:$0xf]
        %v1713 = vld [vmem:[%s1699 + $0x34] sm:$0xf]
        %v1714 = vld [vmem:[%s1699 + $0x38] sm:$0x1]
        %v1715 = vld [vmem:[%s1699 + $0x3c] sm:$0xf]
        %v1716 = vld [vmem:[%s1699 + $0x40] sm:$0xf]
        %v1717 = vld [vmem:[%s1699 + $0x44] sm:$0x1]
        %v1718 = vld [vmem:[%s1699 + $0x48] sm:$0xf]
        %v1719 = vld [vmem:[%s1699 + $0x4c] sm:$0xf]
        %v1720 = vld [vmem:[%s1699 + $0x50] sm:$0x1]
        %v1721 = vld [vmem:[%s1699 + $0x54] sm:$0xf]
        %v1722 = vld [vmem:[%s1699 + $0x58] sm:$0xf]
        %v1723 = vld [vmem:[%s1699 + $0x5c] sm:$0x1]
        %v1724 = vunpack.c.l.bf16 %v1700
        %v1725 = vunpack.c.l.bf16 %v1701
        %v1726 = vunpack.c.l.bf16 %v1702
        %v1727 = vunpack.c.l.bf16 %v1703
        %v1728 = vunpack.c.l.bf16 %v1704
        %v1729 = vunpack.c.l.bf16 %v1705
        %v1730 = vunpack.c.l.bf16 %v1706
        %v1731 = vunpack.c.l.bf16 %v1707
        %v1732 = vunpack.c.l.bf16 %v1708
        %v1733 = vunpack.c.l.bf16 %v1709
        %v1734 = vunpack.c.l.bf16 %v1710
        %v1735 = vunpack.c.l.bf16 %v1711
        %v1736 = vunpack.c.l.bf16 %v1712
        %v1737 = vunpack.c.l.bf16 %v1713
        %v1738 = vunpack.c.l.bf16 %v1714
        %v1739 = vunpack.c.l.bf16 %v1715
        %v1740 = vunpack.c.l.bf16 %v1716
        %v1741 = vunpack.c.l.bf16 %v1717
        %v1742 = vunpack.c.l.bf16 %v1718
        %v1743 = vunpack.c.l.bf16 %v1719
        %v1744 = vunpack.c.l.bf16 %v1720
        %v1745 = vunpack.c.l.bf16 %v1721
        %v1746 = vunpack.c.l.bf16 %v1722
        %v1747 = vunpack.c.l.bf16 %v1723
        %v1748 = vpack.c.bf16 %v1725, %v1724
        %v1749 = vpack.c.bf16 %v1728, %v1727
        %v1750 = vpack.c.bf16 %v1731, %v1730
        %v1751 = vpack.c.bf16 %v1734, %v1733
        %v1752 = vpack.c.bf16 %v1737, %v1736
        %v1753 = vpack.c.bf16 %v1740, %v1739
        %v1754 = vpack.c.bf16 %v1743, %v1742
        %v1755 = vpack.c.bf16 %v1746, %v1745
        %s1756 = scalar_lea.vmem %s1, 384
        %v1757 = vld [vmem:[%s1756] sm:$0xf]
        %v1758 = vld [vmem:[%s1756 + $0x4] sm:$0xf]
        %v1759 = vld [vmem:[%s1756 + $0x8] sm:$0xf]
        %v1760 = vld [vmem:[%s1756 + $0xc] sm:$0xf]
        %v1761 = vld [vmem:[%s1756 + $0x10] sm:$0xf]
        %v1762 = vld [vmem:[%s1756 + $0x14] sm:$0xf]
        %v1763 = vld [vmem:[%s1756 + $0x18] sm:$0xf]
        %v1764 = vld [vmem:[%s1756 + $0x1c] sm:$0xf]
        %v1765 = vld [vmem:[%s1756 + $0x20] sm:$0xf]
        %v1766 = vld [vmem:[%s1756 + $0x24] sm:$0xf]
        %v1767 = vld [vmem:[%s1756 + $0x28] sm:$0xf]
        %v1768 = vld [vmem:[%s1756 + $0x2c] sm:$0xf]
        %v1769 = vld [vmem:[%s1756 + $0x30] sm:$0xf]
        %v1770 = vld [vmem:[%s1756 + $0x34] sm:$0xf]
        %v1771 = vld [vmem:[%s1756 + $0x38] sm:$0xf]
        %v1772 = vld [vmem:[%s1756 + $0x3c] sm:$0xf]
        %v1789 = vunpack.c.l.b16 %v1757
        %v1790 = vunpack.c.l.b16 %v1758
        %v1791 = vunpack.c.l.b16 %v1759
        %v1792 = vunpack.c.l.b16 %v1760
        %v1793 = vunpack.c.l.b16 %v1761
        %v1794 = vunpack.c.l.b16 %v1762
        %v1795 = vunpack.c.l.b16 %v1763
        %v1796 = vunpack.c.l.b16 %v1764
        %v1797 = vunpack.c.l.b16 %v1765
        %v1798 = vunpack.c.l.b16 %v1766
        %v1799 = vunpack.c.l.b16 %v1767
        %v1800 = vunpack.c.l.b16 %v1768
        %v1801 = vunpack.c.l.b16 %v1769
        %v1802 = vunpack.c.l.b16 %v1770
        %v1803 = vunpack.c.l.b16 %v1771
        %v1804 = vunpack.c.l.b16 %v1772
        %v1805 = vpack.c.b16 %v1790, %v1789
        %v1806 = vpack.c.b16 %v1792, %v1791
        %v1807 = vpack.c.b16 %v1794, %v1793
        %v1808 = vpack.c.b16 %v1796, %v1795
        %v1809 = vpack.c.b16 %v1798, %v1797
        %v1810 = vpack.c.b16 %v1800, %v1799
        %v1811 = vpack.c.b16 %v1802, %v1801
        %v1812 = vpack.c.b16 %v1804, %v1803
        %1821 = vmatprep.subr.bf16.mxu0 0
        %1822 = vmatpush1.bf16.msra.mxu0 %v1805
        %1823 = vmatprep.subr.bf16.mxu0 0
        %1824 = vmatpush1.bf16.msra.mxu0 %v1806
        %1825 = vmatprep.subr.bf16.mxu0 0
        %1826 = vmatpush1.bf16.msra.mxu0 %v1807
        %1827 = vmatprep.subr.bf16.mxu0 0
        %1828 = vmatpush1.bf16.msra.mxu0 %v1808
        %1829 = vmatprep.subr.bf16.mxu0 0
        %1830 = vmatpush1.bf16.msra.mxu0 %v1809
        %1831 = vmatprep.subr.bf16.mxu0 0
        %1832 = vmatpush1.bf16.msra.mxu0 %v1810
        %1833 = vmatprep.subr.bf16.mxu0 0
        %1834 = vmatpush1.bf16.msra.mxu0 %v1811
        %1835 = vmatprep.subr.bf16.mxu0 0
        %1836 = vmatpush1.bf16.msra.mxu0 %v1812
        %1837 = vmatprep.subr.bf16.mxu0 0
        %1838 = vmatpush1.bf16.msra.mxu0 0
        %1839 = vmatprep.subr.bf16.mxu0 0
        %1840 = vmatpush1.bf16.msra.mxu0 0
        %1841 = vmatprep.subr.bf16.mxu0 0
        %1842 = vmatpush1.bf16.msra.mxu0 0
        %1843 = vmatprep.subr.bf16.mxu0 0
        %1844 = vmatpush1.bf16.msra.mxu0 0
        %1845 = vmatprep.subr.bf16.mxu0 0
        %1846 = vmatpush1.bf16.msra.mxu0 0
        %1847 = vmatprep.subr.bf16.mxu0 0
        %1848 = vmatpush1.bf16.msra.mxu0 0
        %1849 = vmatprep.subr.bf16.mxu0 0
        %1850 = vmatpush1.bf16.msra.mxu0 0
        %1851 = vmatprep.subr.bf16.mxu0 0
        %1852 = vmatpush1.bf16.msra.mxu0 0
        %1853 = vmatprep.mubr.bf16.mxu0 0
        %1854 = vmatmul.mubr.bf16.gmra.mrb[0].mxu0 %v1748
        %v1855 = vpop.f32.mrb[0].mxu0
        %v1856 = vadd.f32 0.0, %v1855
        %v1857 = vpop.f32.mrb[0].mxu0
        %v1858 = vpop.f32.mrb[0].mxu0
        %v1859 = vadd.f32 0.0, %v1858
        %v1860 = vpop.f32.mrb[0].mxu0
        %1861 = vmatprep.mubr.bf16.mxu0 0
        %1862 = vmatmul.mubr.bf16.gmra.mrb[0].mxu0 %v1749
        %v1863 = vpop.f32.mrb[0].mxu0
        %v1864 = vadd.f32 0.0, %v1863
        %v1865 = vpop.f32.mrb[0].mxu0
        %v1866 = vpop.f32.mrb[0].mxu0
        %v1867 = vadd.f32 0.0, %v1866
        %v1868 = vpop.f32.mrb[0].mxu0
        %1869 = vmatprep.mubr.bf16.mxu0 0
        %1870 = vmatmul.mubr.bf16.gmra.mrb[0].mxu0 %v1750
        %v1871 = vpop.f32.mrb[0].mxu0
        %v1872 = vadd.f32 0.0, %v1871
        %v1873 = vpop.f32.mrb[0].mxu0
        %v1874 = vpop.f32.mrb[0].mxu0
        %v1875 = vadd.f32 0.0, %v1874
        %v1876 = vpop.f32.mrb[0].mxu0
        %1877 = vmatprep.mubr.bf16.mxu0 0
        %1878 = vmatmul.mubr.bf16.gmra.mrb[0].mxu0 %v1751
        %v1879 = vpop.f32.mrb[0].mxu0
        %v1880 = vadd.f32 0.0, %v1879
        %v1881 = vpop.f32.mrb[0].mxu0
        %v1882 = vpop.f32.mrb[0].mxu0
        %v1883 = vadd.f32 0.0, %v1882
        %v1884 = vpop.f32.mrb[0].mxu0
        %1885 = vmatprep.mubr.bf16.mxu0 0
        %1886 = vmatmul.mubr.bf16.gmra.mrb[0].mxu0 %v1752
        %v1887 = vpop.f32.mrb[0].mxu0
        %v1888 = vadd.f32 0.0, %v1887
        %v1889 = vpop.f32.mrb[0].mxu0
        %v1890 = vpop.f32.mrb[0].mxu0
        %v1891 = vadd.f32 0.0, %v1890
        %v1892 = vpop.f32.mrb[0].mxu0
        %1893 = vmatprep.mubr.bf16.mxu0 0
        %1894 = vmatmul.mubr.bf16.gmra.mrb[0].mxu0 %v1753
        %v1895 = vpop.f32.mrb[0].mxu0
        %v1896 = vadd.f32 0.0, %v1895
        %v1897 = vpop.f32.mrb[0].mxu0
        %v1898 = vpop.f32.mrb[0].mxu0
        %v1899 = vadd.f32 0.0, %v1898
        %v1900 = vpop.f32.mrb[0].mxu0
        %1901 = vmatprep.mubr.bf16.mxu0 0
        %1902 = vmatmul.mubr.bf16.gmra.mrb[0].mxu0 %v1754
        %v1903 = vpop.f32.mrb[0].mxu0
        %v1904 = vadd.f32 0.0, %v1903
        %v1905 = vpop.f32.mrb[0].mxu0
        %v1906 = vpop.f32.mrb[0].mxu0
        %v1907 = vadd.f32 0.0, %v1906
        %v1908 = vpop.f32.mrb[0].mxu0
        %1909 = vmatprep.mubr.bf16.mxu0 0
        %1910 = vmatmul.mubr.bf16.gmra.mrb[0].mxu0 %v1755
        %v1911 = vpop.f32.mrb[0].mxu0
        %v1912 = vadd.f32 0.0, %v1911
        %v1913 = vpop.f32.mrb[0].mxu0
        %v1914 = vpop.f32.mrb[0].mxu0
        %v1915 = vadd.f32 0.0, %v1914
        %v1916 = vpop.f32.mrb[0].mxu0
        %1917 = vdwg.mxu0
        %v1918 = vadd.f32 %v1683, %v1856
        %v1919 = vadd.f32 %v1684, %v1859
        %v1920 = vadd.f32 %v1685, %v1864
        %v1921 = vadd.f32 %v1686, %v1867
        %v1922 = vadd.f32 %v1687, %v1872
        %v1923 = vadd.f32 %v1688, %v1875
        %v1924 = vadd.f32 %v1689, %v1880
        %v1925 = vadd.f32 %v1690, %v1883
        %v1926 = vadd.f32 %v1691, %v1888
        %v1927 = vadd.f32 %v1692, %v1891
        %v1928 = vadd.f32 %v1693, %v1896
        %v1929 = vadd.f32 %v1694, %v1899
        %v1930 = vadd.f32 %v1695, %v1904
        %v1931 = vadd.f32 %v1696, %v1907
        %v1932 = vadd.f32 %v1697, %v1912
        %v1933 = vadd.f32 %v1698, %v1915
        %v1958 = vrot.slane %v1724, 1
        %v1959 = vrot.slane %v1725, 1
        %v1960 = vsel %vm341, %v1958, %v1959
        %v1961 = vrot.slane %v1726, 1
        %v1962 = vsel %vm341, %v1959, %v1961
        %v1963 = vrot.slane %v1727, 1
        %v1964 = vrot.slane %v1728, 1
        %v1965 = vsel %vm341, %v1963, %v1964
        %v1966 = vrot.slane %v1729, 1
        %v1967 = vsel %vm341, %v1964, %v1966
        %v1968 = vrot.slane %v1730, 1
        %v1969 = vrot.slane %v1731, 1
        %v1970 = vsel %vm341, %v1968, %v1969
        %v1971 = vrot.slane %v1732, 1
        %v1972 = vsel %vm341, %v1969, %v1971
        %v1973 = vrot.slane %v1733, 1
        %v1974 = vrot.slane %v1734, 1
        %v1975 = vsel %vm341, %v1973, %v1974
        %v1976 = vrot.slane %v1735, 1
        %v1977 = vsel %vm341, %v1974, %v1976
        %v1978 = vrot.slane %v1736, 1
        %v1979 = vrot.slane %v1737, 1
        %v1980 = vsel %vm341, %v1978, %v1979
        %v1981 = vrot.slane %v1738, 1
        %v1982 = vsel %vm341, %v1979, %v1981
        %v1983 = vrot.slane %v1739, 1
        %v1984 = vrot.slane %v1740, 1
        %v1985 = vsel %vm341, %v1983, %v1984
        %v1986 = vrot.slane %v1741, 1
        %v1987 = vsel %vm341, %v1984, %v1986
        %v1988 = vrot.slane %v1742, 1
        %v1989 = vrot.slane %v1743, 1
        %v1990 = vsel %vm341, %v1988, %v1989
        %v1991 = vrot.slane %v1744, 1
        %v1992 = vsel %vm341, %v1989, %v1991
        %v1993 = vrot.slane %v1745, 1
        %v1994 = vrot.slane %v1746, 1
        %v1995 = vsel %vm341, %v1993, %v1994
        %v1996 = vrot.slane %v1747, 1
        %v1997 = vsel %vm341, %v1994, %v1996
        %v2014 = vpack.c.bf16 %v1962, %v1960
        %v2015 = vpack.c.bf16 %v1967, %v1965
        %v2016 = vpack.c.bf16 %v1972, %v1970
        %v2017 = vpack.c.bf16 %v1977, %v1975
        %v2018 = vpack.c.bf16 %v1982, %v1980
        %v2019 = vpack.c.bf16 %v1987, %v1985
        %v2020 = vpack.c.bf16 %v1992, %v1990
        %v2021 = vpack.c.bf16 %v1997, %v1995
        %s2022 = scalar_lea.vmem %s1, 448
        %v2023 = vld [vmem:[%s2022] sm:$0xf]
        %v2024 = vld [vmem:[%s2022 + $0x4] sm:$0xf]
        %v2025 = vld [vmem:[%s2022 + $0x8] sm:$0xf]
        %v2026 = vld [vmem:[%s2022 + $0xc] sm:$0xf]
        %v2027 = vld [vmem:[%s2022 + $0x10] sm:$0xf]
        %v2028 = vld [vmem:[%s2022 + $0x14] sm:$0xf]
        %v2029 = vld [vmem:[%s2022 + $0x18] sm:$0xf]
        %v2030 = vld [vmem:[%s2022 + $0x1c] sm:$0xf]
        %v2031 = vld [vmem:[%s2022 + $0x20] sm:$0xf]
        %v2032 = vld [vmem:[%s2022 + $0x24] sm:$0xf]
        %v2033 = vld [vmem:[%s2022 + $0x28] sm:$0xf]
        %v2034 = vld [vmem:[%s2022 + $0x2c] sm:$0xf]
        %v2035 = vld [vmem:[%s2022 + $0x30] sm:$0xf]
        %v2036 = vld [vmem:[%s2022 + $0x34] sm:$0xf]
        %v2037 = vld [vmem:[%s2022 + $0x38] sm:$0xf]
        %v2038 = vld [vmem:[%s2022 + $0x3c] sm:$0xf]
        %v2055 = vunpack.c.l.b16 %v2023
        %v2056 = vunpack.c.l.b16 %v2024
        %v2057 = vunpack.c.l.b16 %v2025
        %v2058 = vunpack.c.l.b16 %v2026
        %v2059 = vunpack.c.l.b16 %v2027
        %v2060 = vunpack.c.l.b16 %v2028
        %v2061 = vunpack.c.l.b16 %v2029
        %v2062 = vunpack.c.l.b16 %v2030
        %v2063 = vunpack.c.l.b16 %v2031
        %v2064 = vunpack.c.l.b16 %v2032
        %v2065 = vunpack.c.l.b16 %v2033
        %v2066 = vunpack.c.l.b16 %v2034
        %v2067 = vunpack.c.l.b16 %v2035
        %v2068 = vunpack.c.l.b16 %v2036
        %v2069 = vunpack.c.l.b16 %v2037
        %v2070 = vunpack.c.l.b16 %v2038
        %v2071 = vpack.c.b16 %v2056, %v2055
        %v2072 = vpack.c.b16 %v2058, %v2057
        %v2073 = vpack.c.b16 %v2060, %v2059
        %v2074 = vpack.c.b16 %v2062, %v2061
        %v2075 = vpack.c.b16 %v2064, %v2063
        %v2076 = vpack.c.b16 %v2066, %v2065
        %v2077 = vpack.c.b16 %v2068, %v2067
        %v2078 = vpack.c.b16 %v2070, %v2069
        %2087 = vmatprep.subr.bf16.mxu0 0
        %2088 = vmatpush1.bf16.msra.mxu0 %v2071
        %2089 = vmatprep.subr.bf16.mxu0 0
        %2090 = vmatpush1.bf16.msra.mxu0 %v2072
        %2091 = vmatprep.subr.bf16.mxu0 0
        %2092 = vmatpush1.bf16.msra.mxu0 %v2073
        %2093 = vmatprep.subr.bf16.mxu0 0
        %2094 = vmatpush1.bf16.msra.mxu0 %v2074
        %2095 = vmatprep.subr.bf16.mxu0 0
        %2096 = vmatpush1.bf16.msra.mxu0 %v2075
        %2097 = vmatprep.subr.bf16.mxu0 0
        %2098 = vmatpush1.bf16.msra.mxu0 %v2076
        %2099 = vmatprep.subr.bf16.mxu0 0
        %2100 = vmatpush1.bf16.msra.mxu0 %v2077
        %2101 = vmatprep.subr.bf16.mxu0 0
        %2102 = vmatpush1.bf16.msra.mxu0 %v2078
        %2103 = vmatprep.subr.bf16.mxu0 0
        %2104 = vmatpush1.bf16.msra.mxu0 0
        %2105 = vmatprep.subr.bf16.mxu0 0
        %2106 = vmatpush1.bf16.msra.mxu0 0
        %2107 = vmatprep.subr.bf16.mxu0 0
        %2108 = vmatpush1.bf16.msra.mxu0 0
        %2109 = vmatprep.subr.bf16.mxu0 0
        %2110 = vmatpush1.bf16.msra.mxu0 0
        %2111 = vmatprep.subr.bf16.mxu0 0
        %2112 = vmatpush1.bf16.msra.mxu0 0
        %2113 = vmatprep.subr.bf16.mxu0 0
        %2114 = vmatpush1.bf16.msra.mxu0 0
        %2115 = vmatprep.subr.bf16.mxu0 0
        %2116 = vmatpush1.bf16.msra.mxu0 0
        %2117 = vmatprep.subr.bf16.mxu0 0
        %2118 = vmatpush1.bf16.msra.mxu0 0
        %2119 = vmatprep.mubr.bf16.mxu0 0
        %2120 = vmatmul.mubr.bf16.gmra.mrb[0].mxu0 %v2014
        %v2121 = vpop.f32.mrb[0].mxu0
        %v2122 = vadd.f32 0.0, %v2121
        %v2123 = vpop.f32.mrb[0].mxu0
        %v2124 = vpop.f32.mrb[0].mxu0
        %v2125 = vadd.f32 0.0, %v2124
        %v2126 = vpop.f32.mrb[0].mxu0
        %2127 = vmatprep.mubr.bf16.mxu0 0
        %2128 = vmatmul.mubr.bf16.gmra.mrb[0].mxu0 %v2015
        %v2129 = vpop.f32.mrb[0].mxu0
        %v2130 = vadd.f32 0.0, %v2129
        %v2131 = vpop.f32.mrb[0].mxu0
        %v2132 = vpop.f32.mrb[0].mxu0
        %v2133 = vadd.f32 0.0, %v2132
        %v2134 = vpop.f32.mrb[0].mxu0
        %2135 = vmatprep.mubr.bf16.mxu0 0
        %2136 = vmatmul.mubr.bf16.gmra.mrb[0].mxu0 %v2016
        %v2137 = vpop.f32.mrb[0].mxu0
        %v2138 = vadd.f32 0.0, %v2137
        %v2139 = vpop.f32.mrb[0].mxu0
        %v2140 = vpop.f32.mrb[0].mxu0
        %v2141 = vadd.f32 0.0, %v2140
        %v2142 = vpop.f32.mrb[0].mxu0
        %2143 = vmatprep.mubr.bf16.mxu0 0
        %2144 = vmatmul.mubr.bf16.gmra.mrb[0].mxu0 %v2017
        %v2145 = vpop.f32.mrb[0].mxu0
        %v2146 = vadd.f32 0.0, %v2145
        %v2147 = vpop.f32.mrb[0].mxu0
        %v2148 = vpop.f32.mrb[0].mxu0
        %v2149 = vadd.f32 0.0, %v2148
        %v2150 = vpop.f32.mrb[0].mxu0
        %2151 = vmatprep.mubr.bf16.mxu0 0
        %2152 = vmatmul.mubr.bf16.gmra.mrb[0].mxu0 %v2018
        %v2153 = vpop.f32.mrb[0].mxu0
        %v2154 = vadd.f32 0.0, %v2153
        %v2155 = vpop.f32.mrb[0].mxu0
        %v2156 = vpop.f32.mrb[0].mxu0
        %v2157 = vadd.f32 0.0, %v2156
        %v2158 = vpop.f32.mrb[0].mxu0
        %2159 = vmatprep.mubr.bf16.mxu0 0
        %2160 = vmatmul.mubr.bf16.gmra.mrb[0].mxu0 %v2019
        %v2161 = vpop.f32.mrb[0].mxu0
        %v2162 = vadd.f32 0.0, %v2161
        %v2163 = vpop.f32.mrb[0].mxu0
        %v2164 = vpop.f32.mrb[0].mxu0
        %v2165 = vadd.f32 0.0, %v2164
        %v2166 = vpop.f32.mrb[0].mxu0
        %2167 = vmatprep.mubr.bf16.mxu0 0
        %2168 = vmatmul.mubr.bf16.gmra.mrb[0].mxu0 %v2020
        %v2169 = vpop.f32.mrb[0].mxu0
        %v2170 = vadd.f32 0.0, %v2169
        %v2171 = vpop.f32.mrb[0].mxu0
        %v2172 = vpop.f32.mrb[0].mxu0
        %v2173 = vadd.f32 0.0, %v2172
        %v2174 = vpop.f32.mrb[0].mxu0
        %2175 = vmatprep.mubr.bf16.mxu0 0
        %2176 = vmatmul.mubr.bf16.gmra.mrb[0].mxu0 %v2021
        %v2177 = vpop.f32.mrb[0].mxu0
        %v2178 = vadd.f32 0.0, %v2177
        %v2179 = vpop.f32.mrb[0].mxu0
        %v2180 = vpop.f32.mrb[0].mxu0
        %v2181 = vadd.f32 0.0, %v2180
        %v2182 = vpop.f32.mrb[0].mxu0
        %2183 = vdwg.mxu0
        %v2184 = vadd.f32 %v1918, %v2122
        %v2185 = vadd.f32 %v1919, %v2125
        %v2186 = vadd.f32 %v1920, %v2130
        %v2187 = vadd.f32 %v1921, %v2133
        %v2188 = vadd.f32 %v1922, %v2138
        %v2189 = vadd.f32 %v1923, %v2141
        %v2190 = vadd.f32 %v1924, %v2146
        %v2191 = vadd.f32 %v1925, %v2149
        %v2192 = vadd.f32 %v1926, %v2154
        %v2193 = vadd.f32 %v1927, %v2157
        %v2194 = vadd.f32 %v1928, %v2162
        %v2195 = vadd.f32 %v1929, %v2165
        %v2196 = vadd.f32 %v1930, %v2170
        %v2197 = vadd.f32 %v1931, %v2173
        %v2198 = vadd.f32 %v1932, %v2178
        %v2199 = vadd.f32 %v1933, %v2181
        %v2200 = vrot.slane %v1724, 2
        %v2201 = vrot.slane %v1725, 2
        %v2202 = vsel %vm713, %v2200, %v2201
        %v2203 = vrot.slane %v1726, 2
        %v2204 = vsel %vm713, %v2201, %v2203
        %v2205 = vrot.slane %v1727, 2
        %v2206 = vrot.slane %v1728, 2
        %v2207 = vsel %vm713, %v2205, %v2206
        %v2208 = vrot.slane %v1729, 2
        %v2209 = vsel %vm713, %v2206, %v2208
        %v2210 = vrot.slane %v1730, 2
        %v2211 = vrot.slane %v1731, 2
        %v2212 = vsel %vm713, %v2210, %v2211
        %v2213 = vrot.slane %v1732, 2
        %v2214 = vsel %vm713, %v2211, %v2213
        %v2215 = vrot.slane %v1733, 2
        %v2216 = vrot.slane %v1734, 2
        %v2217 = vsel %vm713, %v2215, %v2216
        %v2218 = vrot.slane %v1735, 2
        %v2219 = vsel %vm713, %v2216, %v2218
        %v2220 = vrot.slane %v1736, 2
        %v2221 = vrot.slane %v1737, 2
        %v2222 = vsel %vm713, %v2220, %v2221
        %v2223 = vrot.slane %v1738, 2
        %v2224 = vsel %vm713, %v2221, %v2223
        %v2225 = vrot.slane %v1739, 2
        %v2226 = vrot.slane %v1740, 2
        %v2227 = vsel %vm713, %v2225, %v2226
        %v2228 = vrot.slane %v1741, 2
        %v2229 = vsel %vm713, %v2226, %v2228
        %v2230 = vrot.slane %v1742, 2
        %v2231 = vrot.slane %v1743, 2
        %v2232 = vsel %vm713, %v2230, %v2231
        %v2233 = vrot.slane %v1744, 2
        %v2234 = vsel %vm713, %v2231, %v2233
        %v2235 = vrot.slane %v1745, 2
        %v2236 = vrot.slane %v1746, 2
        %v2237 = vsel %vm713, %v2235, %v2236
        %v2238 = vrot.slane %v1747, 2
        %v2239 = vsel %vm713, %v2236, %v2238
        %v2256 = vpack.c.bf16 %v2204, %v2202
        %v2257 = vpack.c.bf16 %v2209, %v2207
        %v2258 = vpack.c.bf16 %v2214, %v2212
        %v2259 = vpack.c.bf16 %v2219, %v2217
        %v2260 = vpack.c.bf16 %v2224, %v2222
        %v2261 = vpack.c.bf16 %v2229, %v2227
        %v2262 = vpack.c.bf16 %v2234, %v2232
        %v2263 = vpack.c.bf16 %v2239, %v2237
        %s2264 = scalar_lea.vmem %s1, 512
        %v2265 = vld [vmem:[%s2264] sm:$0xf]
        %v2266 = vld [vmem:[%s2264 + $0x4] sm:$0xf]
        %v2267 = vld [vmem:[%s2264 + $0x8] sm:$0xf]
        %v2268 = vld [vmem:[%s2264 + $0xc] sm:$0xf]
        %v2269 = vld [vmem:[%s2264 + $0x10] sm:$0xf]
        %v2270 = vld [vmem:[%s2264 + $0x14] sm:$0xf]
        %v2271 = vld [vmem:[%s2264 + $0x18] sm:$0xf]
        %v2272 = vld [vmem:[%s2264 + $0x1c] sm:$0xf]
        %v2273 = vld [vmem:[%s2264 + $0x20] sm:$0xf]
        %v2274 = vld [vmem:[%s2264 + $0x24] sm:$0xf]
        %v2275 = vld [vmem:[%s2264 + $0x28] sm:$0xf]
        %v2276 = vld [vmem:[%s2264 + $0x2c] sm:$0xf]
        %v2277 = vld [vmem:[%s2264 + $0x30] sm:$0xf]
        %v2278 = vld [vmem:[%s2264 + $0x34] sm:$0xf]
        %v2279 = vld [vmem:[%s2264 + $0x38] sm:$0xf]
        %v2280 = vld [vmem:[%s2264 + $0x3c] sm:$0xf]
        %v2297 = vunpack.c.l.b16 %v2265
        %v2298 = vunpack.c.l.b16 %v2266
        %v2299 = vunpack.c.l.b16 %v2267
        %v2300 = vunpack.c.l.b16 %v2268
        %v2301 = vunpack.c.l.b16 %v2269
        %v2302 = vunpack.c.l.b16 %v2270
        %v2303 = vunpack.c.l.b16 %v2271
        %v2304 = vunpack.c.l.b16 %v2272
        %v2305 = vunpack.c.l.b16 %v2273
        %v2306 = vunpack.c.l.b16 %v2274
        %v2307 = vunpack.c.l.b16 %v2275
        %v2308 = vunpack.c.l.b16 %v2276
        %v2309 = vunpack.c.l.b16 %v2277
        %v2310 = vunpack.c.l.b16 %v2278
        %v2311 = vunpack.c.l.b16 %v2279
        %v2312 = vunpack.c.l.b16 %v2280
        %v2313 = vpack.c.b16 %v2298, %v2297
        %v2314 = vpack.c.b16 %v2300, %v2299
        %v2315 = vpack.c.b16 %v2302, %v2301
        %v2316 = vpack.c.b16 %v2304, %v2303
        %v2317 = vpack.c.b16 %v2306, %v2305
        %v2318 = vpack.c.b16 %v2308, %v2307
        %v2319 = vpack.c.b16 %v2310, %v2309
        %v2320 = vpack.c.b16 %v2312, %v2311
        %2329 = vmatprep.subr.bf16.mxu0 0
        %2330 = vmatpush1.bf16.msra.mxu0 %v2313
        %2331 = vmatprep.subr.bf16.mxu0 0
        %2332 = vmatpush1.bf16.msra.mxu0 %v2314
        %2333 = vmatprep.subr.bf16.mxu0 0
        %2334 = vmatpush1.bf16.msra.mxu0 %v2315
        %2335 = vmatprep.subr.bf16.mxu0 0
        %2336 = vmatpush1.bf16.msra.mxu0 %v2316
        %2337 = vmatprep.subr.bf16.mxu0 0
        %2338 = vmatpush1.bf16.msra.mxu0 %v2317
        %2339 = vmatprep.subr.bf16.mxu0 0
        %2340 = vmatpush1.bf16.msra.mxu0 %v2318
        %2341 = vmatprep.subr.bf16.mxu0 0
        %2342 = vmatpush1.bf16.msra.mxu0 %v2319
        %2343 = vmatprep.subr.bf16.mxu0 0
        %2344 = vmatpush1.bf16.msra.mxu0 %v2320
        %2345 = vmatprep.subr.bf16.mxu0 0
        %2346 = vmatpush1.bf16.msra.mxu0 0
        %2347 = vmatprep.subr.bf16.mxu0 0
        %2348 = vmatpush1.bf16.msra.mxu0 0
        %2349 = vmatprep.subr.bf16.mxu0 0
        %2350 = vmatpush1.bf16.msra.mxu0 0
        %2351 = vmatprep.subr.bf16.mxu0 0
        %2352 = vmatpush1.bf16.msra.mxu0 0
        %2353 = vmatprep.subr.bf16.mxu0 0
        %2354 = vmatpush1.bf16.msra.mxu0 0
        %2355 = vmatprep.subr.bf16.mxu0 0
        %2356 = vmatpush1.bf16.msra.mxu0 0
        %2357 = vmatprep.subr.bf16.mxu0 0
        %2358 = vmatpush1.bf16.msra.mxu0 0
        %2359 = vmatprep.subr.bf16.mxu0 0
        %2360 = vmatpush1.bf16.msra.mxu0 0
        %2361 = vmatprep.mubr.bf16.mxu0 0
        %2362 = vmatmul.mubr.bf16.gmra.mrb[0].mxu0 %v2256
        %v2363 = vpop.f32.mrb[0].mxu0
        %v2364 = vadd.f32 0.0, %v2363
        %v2365 = vpop.f32.mrb[0].mxu0
        %v2366 = vpop.f32.mrb[0].mxu0
        %v2367 = vadd.f32 0.0, %v2366
        %v2368 = vpop.f32.mrb[0].mxu0
        %2369 = vmatprep.mubr.bf16.mxu0 0
        %2370 = vmatmul.mubr.bf16.gmra.mrb[0].mxu0 %v2257
        %v2371 = vpop.f32.mrb[0].mxu0
        %v2372 = vadd.f32 0.0, %v2371
        %v2373 = vpop.f32.mrb[0].mxu0
        %v2374 = vpop.f32.mrb[0].mxu0
        %v2375 = vadd.f32 0.0, %v2374
        %v2376 = vpop.f32.mrb[0].mxu0
        %2377 = vmatprep.mubr.bf16.mxu0 0
        %2378 = vmatmul.mubr.bf16.gmra.mrb[0].mxu0 %v2258
        %v2379 = vpop.f32.mrb[0].mxu0
        %v2380 = vadd.f32 0.0, %v2379
        %v2381 = vpop.f32.mrb[0].mxu0
        %v2382 = vpop.f32.mrb[0].mxu0
        %v2383 = vadd.f32 0.0, %v2382
        %v2384 = vpop.f32.mrb[0].mxu0
        %2385 = vmatprep.mubr.bf16.mxu0 0
        %2386 = vmatmul.mubr.bf16.gmra.mrb[0].mxu0 %v2259
        %v2387 = vpop.f32.mrb[0].mxu0
        %v2388 = vadd.f32 0.0, %v2387
        %v2389 = vpop.f32.mrb[0].mxu0
        %v2390 = vpop.f32.mrb[0].mxu0
        %v2391 = vadd.f32 0.0, %v2390
        %v2392 = vpop.f32.mrb[0].mxu0
        %2393 = vmatprep.mubr.bf16.mxu0 0
        %2394 = vmatmul.mubr.bf16.gmra.mrb[0].mxu0 %v2260
        %v2395 = vpop.f32.mrb[0].mxu0
        %v2396 = vadd.f32 0.0, %v2395
        %v2397 = vpop.f32.mrb[0].mxu0
        %v2398 = vpop.f32.mrb[0].mxu0
        %v2399 = vadd.f32 0.0, %v2398
        %v2400 = vpop.f32.mrb[0].mxu0
        %2401 = vmatprep.mubr.bf16.mxu0 0
        %2402 = vmatmul.mubr.bf16.gmra.mrb[0].mxu0 %v2261
        %v2403 = vpop.f32.mrb[0].mxu0
        %v2404 = vadd.f32 0.0, %v2403
        %v2405 = vpop.f32.mrb[0].mxu0
        %v2406 = vpop.f32.mrb[0].mxu0
        %v2407 = vadd.f32 0.0, %v2406
        %v2408 = vpop.f32.mrb[0].mxu0
        %2409 = vmatprep.mubr.bf16.mxu0 0
        %2410 = vmatmul.mubr.bf16.gmra.mrb[0].mxu0 %v2262
        %v2411 = vpop.f32.mrb[0].mxu0
        %v2412 = vadd.f32 0.0, %v2411
        %v2413 = vpop.f32.mrb[0].mxu0
        %v2414 = vpop.f32.mrb[0].mxu0
        %v2415 = vadd.f32 0.0, %v2414
        %v2416 = vpop.f32.mrb[0].mxu0
        %2417 = vmatprep.mubr.bf16.mxu0 0
        %2418 = vmatmul.mubr.bf16.gmra.mrb[0].mxu0 %v2263
        %v2419 = vpop.f32.mrb[0].mxu0
        %v2420 = vadd.f32 0.0, %v2419
        %v2421 = vpop.f32.mrb[0].mxu0
        %v2422 = vpop.f32.mrb[0].mxu0
        %v2423 = vadd.f32 0.0, %v2422
        %v2424 = vpop.f32.mrb[0].mxu0
        %2425 = vdwg.mxu0
        %v2426 = vadd.f32 %v2184, %v2364
        %v2427 = vadd.f32 %v2185, %v2367
        %v2428 = vadd.f32 %v2186, %v2372
        %v2429 = vadd.f32 %v2187, %v2375
        %v2430 = vadd.f32 %v2188, %v2380
        %v2431 = vadd.f32 %v2189, %v2383
        %v2432 = vadd.f32 %v2190, %v2388
        %v2433 = vadd.f32 %v2191, %v2391
        %v2434 = vadd.f32 %v2192, %v2396
        %v2435 = vadd.f32 %v2193, %v2399
        %v2436 = vadd.f32 %v2194, %v2404
        %v2437 = vadd.f32 %v2195, %v2407
        %v2438 = vadd.f32 %v2196, %v2412
        %v2439 = vadd.f32 %v2197, %v2415
        %v2440 = vadd.f32 %v2198, %v2420
        %v2441 = vadd.f32 %v2199, %v2423
        %v2442 = vpack.c.bf16 %v2427, %v2426
        %v2443 = vpack.c.bf16 %v2429, %v2428
        %v2444 = vpack.c.bf16 %v2431, %v2430
        %v2445 = vpack.c.bf16 %v2433, %v2432
        %v2446 = vpack.c.bf16 %v2435, %v2434
        %v2447 = vpack.c.bf16 %v2437, %v2436
        %v2448 = vpack.c.bf16 %v2439, %v2438
        %v2449 = vpack.c.bf16 %v2441, %v2440
        %v2458 = vunpack.c.l.b16 %v2442
        %v2459 = vunpack.c.h.b16 %v2442
        %v2460 = vunpack.c.l.b16 %v2443
        %v2461 = vunpack.c.h.b16 %v2443
        %v2462 = vunpack.c.l.b16 %v2444
        %v2463 = vunpack.c.h.b16 %v2444
        %v2464 = vunpack.c.l.b16 %v2445
        %v2465 = vunpack.c.h.b16 %v2445
        %v2466 = vunpack.c.l.b16 %v2446
        %v2467 = vunpack.c.h.b16 %v2446
        %v2468 = vunpack.c.l.b16 %v2447
        %v2469 = vunpack.c.h.b16 %v2447
        %v2470 = vunpack.c.l.b16 %v2448
        %v2471 = vunpack.c.h.b16 %v2448
        %v2472 = vunpack.c.l.b16 %v2449
        %v2473 = vunpack.c.h.b16 %v2449
        %v2474 = vpack.c.b16 %v2458, %v2458
        %v2475 = vpack.c.b16 %v2459, %v2459
        %v2476 = vpack.c.b16 %v2460, %v2460
        %v2477 = vpack.c.b16 %v2461, %v2461
        %v2478 = vpack.c.b16 %v2462, %v2462
        %v2479 = vpack.c.b16 %v2463, %v2463
        %v2480 = vpack.c.b16 %v2464, %v2464
        %v2481 = vpack.c.b16 %v2465, %v2465
        %v2482 = vpack.c.b16 %v2466, %v2466
        %v2483 = vpack.c.b16 %v2467, %v2467
        %v2484 = vpack.c.b16 %v2468, %v2468
        %v2485 = vpack.c.b16 %v2469, %v2469
        %v2486 = vpack.c.b16 %v2470, %v2470
        %v2487 = vpack.c.b16 %v2471, %v2471
        %v2488 = vpack.c.b16 %v2472, %v2472
        %v2489 = vpack.c.b16 %v2473, %v2473
        %2506 = vst [vmem:[%s220] sm:$0xf] %v2474
        %2507 = vst [vmem:[%s220 + $0x4] sm:$0xf] %v2475
        %2508 = vst [vmem:[%s220 + $0x8] sm:$0xf] %v2476
        %2509 = vst [vmem:[%s220 + $0xc] sm:$0xf] %v2477
        %2510 = vst [vmem:[%s220 + $0x10] sm:$0xf] %v2478
        %2511 = vst [vmem:[%s220 + $0x14] sm:$0xf] %v2479
        %2512 = vst [vmem:[%s220 + $0x18] sm:$0xf] %v2480
        %2513 = vst [vmem:[%s220 + $0x1c] sm:$0xf] %v2481
        %2514 = vst [vmem:[%s220 + $0x20] sm:$0xf] %v2482
        %2515 = vst [vmem:[%s220 + $0x24] sm:$0xf] %v2483
        %2516 = vst [vmem:[%s220 + $0x28] sm:$0xf] %v2484
        %2517 = vst [vmem:[%s220 + $0x2c] sm:$0xf] %v2485
        %2518 = vst [vmem:[%s220 + $0x30] sm:$0xf] %v2486
        %2519 = vst [vmem:[%s220 + $0x34] sm:$0xf] %v2487
        %2520 = vst [vmem:[%s220 + $0x38] sm:$0xf] %v2488
        %2521 = vst [vmem:[%s220 + $0x3c] sm:$0xf] %v2489
        %p2522 = scmp.eq.s32.totalorder %s27, 0
        // Predicated region
        $region29: #{tpu_custom_call.1} parent=27 // pred_check
          %p2523 = pneg %p2522
        $region30: #{tpu_custom_call.1} parent=27 // pred_check_branch
          %2525 = sbr.rel (%p2523) target = $region32
        $region31: #{tpu_custom_call.1} parent=27 // pred_region
          %2526 = vst [vmem:[%s226] sm:$0x1] 0.0
          %2527 = vst [vmem:[%s232] sm:$0x1] 0.0
        $region32: #{tpu_custom_call.1} parent=27 // pred_fallthru
          _
        %v2528 = vld [vmem:[%s226] sm:$0x1]
        %v2529 = vadd.f32 %v2426, %v2427
        %v2530 = vadd.f32 %v2529, %v2428
        %v2531 = vadd.f32 %v2530, %v2429
        %v2532 = vadd.f32 %v2531, %v2430
        %v2533 = vadd.f32 %v2532, %v2431
        %v2534 = vadd.f32 %v2533, %v2432
        %v2535 = vadd.f32 %v2534, %v2433
        %v2536 = vadd.f32 %v2535, %v2434
        %v2537 = vadd.f32 %v2536, %v2435
        %v2538 = vadd.f32 %v2537, %v2436
        %v2539 = vadd.f32 %v2538, %v2437
        %v2540 = vadd.f32 %v2539, %v2438
        %v2541 = vadd.f32 %v2540, %v2439
        %v2542 = vadd.f32 %v2541, %v2440
        %v2543 = vadd.f32 %v2542, %v2441
        %v2544 = vrot.slane %v2543, 4
        %v2545 = vadd.f32 %v2543, %v2544
        %v2546 = vrot.slane %v2545, 2
        %v2547 = vadd.f32 %v2545, %v2546
        %v2548 = vrot.slane %v2547, 1
        %v2549 = vadd.f32 %v2547, %v2548
        %v2550 = vadd.f32 %v2528, %v2549
        %2551 = vst [vmem:[%s226] sm:$0x1] %v2550
        %v2552 = vld [vmem:[%s232] sm:$0x1]
        %v2553 = vmul.f32 %v2426, %v2426
        %v2554 = vmul.f32 %v2427, %v2427
        %v2555 = vmul.f32 %v2428, %v2428
        %v2556 = vmul.f32 %v2429, %v2429
        %v2557 = vmul.f32 %v2430, %v2430
        %v2558 = vmul.f32 %v2431, %v2431
        %v2559 = vmul.f32 %v2432, %v2432
        %v2560 = vmul.f32 %v2433, %v2433
        %v2561 = vmul.f32 %v2434, %v2434
        %v2562 = vmul.f32 %v2435, %v2435
        %v2563 = vmul.f32 %v2436, %v2436
        %v2564 = vmul.f32 %v2437, %v2437
        %v2565 = vmul.f32 %v2438, %v2438
        %v2566 = vmul.f32 %v2439, %v2439
        %v2567 = vmul.f32 %v2440, %v2440
        %v2568 = vmul.f32 %v2441, %v2441
        %v2569 = vadd.f32 %v2553, %v2554
        %v2570 = vadd.f32 %v2569, %v2555
        %v2571 = vadd.f32 %v2570, %v2556
        %v2572 = vadd.f32 %v2571, %v2557
        %v2573 = vadd.f32 %v2572, %v2558
        %v2574 = vadd.f32 %v2573, %v2559
        %v2575 = vadd.f32 %v2574, %v2560
        %v2576 = vadd.f32 %v2575, %v2561
        %v2577 = vadd.f32 %v2576, %v2562
        %v2578 = vadd.f32 %v2577, %v2563
        %v2579 = vadd.f32 %v2578, %v2564
        %v2580 = vadd.f32 %v2579, %v2565
        %v2581 = vadd.f32 %v2580, %v2566
        %v2582 = vadd.f32 %v2581, %v2567
        %v2583 = vadd.f32 %v2582, %v2568
        %v2584 = vrot.slane %v2583, 4
        %v2585 = vadd.f32 %v2583, %v2584
        %v2586 = vrot.slane %v2585, 2
        %v2587 = vadd.f32 %v2585, %v2586
        %v2588 = vrot.slane %v2587, 1
        %v2589 = vadd.f32 %v2587, %v2588
        %v2590 = vadd.f32 %v2552, %v2589
        %2591 = vst [vmem:[%s232] sm:$0x1] %v2590
        %s2592 = sand.u32 %s97, 1
        %s2593 = scalar_lea.sflag [#allocation3], %s2592
        %s2594 = sand.u32 %s97, 1
        %s2595 = smul.addr %s2594, 64
        %s2596 = scalar_lea.vmem [#allocation2], %s2595
        %s2597 = sand.u32 %s22, 1
        %s2598 = scalar_lea.sflag [#allocation5], %s2597
        %s2599 = sand.u32 %s123, 1
        %s2600 = scalar_lea.vmem [#allocation4], %s2599
        %s2601 = sand.u32 %s22, 1
        %s2602 = scalar_lea.sflag [#allocation5], %s2601
        %s2603 = sand.u32 %s149, 1
        %s2604 = scalar_lea.vmem [#allocation6], %s2603
        // Predicated region
        $region33: #{tpu_custom_call.1} parent=27 // pred_check
          %p2605 = pneg %p107
        $region34: #{tpu_custom_call.1} parent=27 // pred_check_branch
          %2607 = sbr.rel (%p2605) target = $region36
        $region35: #{tpu_custom_call.1} parent=27 // pred_region
          %s2608 = smul.u32 %s26, 2
          %s2609 = sadd.s32 %s2608, %s27
          %s2611 = ssub.s32 1024, 1024
          %2612 = vsyncadd %s2593, %s2611
          %s2613 = smul.addr %s2609, 16
          %s2614 = smul.addr %s2613, 64
          %s2615 = scalar_lea.hbm %s2, %s2614
          %s2616 = sshll.u32 %s2596, 4
          %s2617 = int_to_ptr.vmem [resolvable:$true] %s2616
          %2622 = dma.vmem_to_hbm [thread:$0]  %s2617, 1024, %s2615, %s2593, 64, 64, 4
        $region36: #{tpu_custom_call.1} parent=27 // pred_fallthru
          _
        // Predicated region
        $region37: #{tpu_custom_call.1} parent=27 // pred_check
          %p2623 = pneg %p133
        $region38: #{tpu_custom_call.1} parent=27 // pred_check_branch
          %2625 = sbr.rel (%p2623) target = $region40
        $region39: #{tpu_custom_call.1} parent=27 // pred_region
          %s2627 = ssub.s32 16, 16
          %2628 = vsyncadd %s2598, %s2627
          %s2629 = smul.addr %s26, 16
          %s2630 = scalar_lea.hbm %s3, %s2629
          %s2632 = sshll.u32 %s2600, 4
          %s2633 = int_to_ptr.vmem [resolvable:$true] %s2632
          %2635 = dma.vmem_to_hbm [thread:$0]  %s2633, 16, %s2630, %s2598
        $region40: #{tpu_custom_call.1} parent=27 // pred_fallthru
          _
        // Predicated region
        $region41: #{tpu_custom_call.1} parent=27 // pred_check
          %p2636 = pneg %p159
        $region42: #{tpu_custom_call.1} parent=27 // pred_check_branch
          %2638 = sbr.rel (%p2636) target = $region44
        $region43: #{tpu_custom_call.1} parent=27 // pred_region
          %s2640 = ssub.s32 16, 16
          %2641 = vsyncadd %s2602, %s2640
          %s2642 = smul.addr %s26, 16
          %s2643 = scalar_lea.hbm %s4, %s2642
          %s2645 = sshll.u32 %s2604, 4
          %s2646 = int_to_ptr.vmem [resolvable:$true] %s2645
          %2648 = dma.vmem_to_hbm [thread:$0]  %s2646, 16, %s2643, %s2602
        $region44: #{tpu_custom_call.1} parent=27 // pred_fallthru
          _
      $region28: #{tpu_custom_call.1} parent=5 // pred_fallthru
        _
      %p2649 = scmp.le.s32.totalorder 2, %s17
      // Predicated region
      $region45: #{tpu_custom_call.1} parent=5 // pred_check
        %p2650 = pneg %p2649
      $region46: #{tpu_custom_call.1} parent=5 // pred_check_branch
        %2652 = sbr.rel (%p2650) target = $region48
      $region47: #{tpu_custom_call.1} parent=5 // pred_region
        %s2653 = ssub.s32 %s17, 2
        // Predicated region
        $region49: #{tpu_custom_call.1} parent=47 // pred_check
          %p2654 = pneg %p113
        $region50: #{tpu_custom_call.1} parent=47 // pred_check_branch
          %2656 = sbr.rel (%p2654) target = $region52
        $region51: #{tpu_custom_call.1} parent=47 // pred_region
          %s2657 = sand.u32 %s98, 1
          %s2658 = scalar_lea.sflag [#allocation3], %s2657
          %s2659 = sand.u32 %s98, 1
          %s2660 = smul.addr %s2659, 64
          %s2661 = scalar_lea.vmem [#allocation2], %s2660
          %2662 = dma.done %s2658, 1024
        $region52: #{tpu_custom_call.1} parent=47 // pred_fallthru
          _
        // Predicated region
        $region53: #{tpu_custom_call.1} parent=47 // pred_check
          %p2663 = pneg %p139
        $region54: #{tpu_custom_call.1} parent=47 // pred_check_branch
          %2665 = sbr.rel (%p2663) target = $region56
        $region55: #{tpu_custom_call.1} parent=47 // pred_region
          %s2666 = sand.u32 %s23, 1
          %s2667 = scalar_lea.sflag [#allocation5], %s2666
          %s2668 = sand.u32 %s124, 1
          %s2669 = scalar_lea.vmem [#allocation4], %s2668
          %2670 = dma.done %s2667, 16
        $region56: #{tpu_custom_call.1} parent=47 // pred_fallthru
          _
        // Predicated region
        $region57: #{tpu_custom_call.1} parent=47 // pred_check
          %p2671 = pneg %p165
        $region58: #{tpu_custom_call.1} parent=47 // pred_check_branch
          %2673 = sbr.rel (%p2671) target = $region60
        $region59: #{tpu_custom_call.1} parent=47 // pred_region
          %s2674 = sand.u32 %s23, 1
          %s2675 = scalar_lea.sflag [#allocation5], %s2674
          %s2676 = sand.u32 %s150, 1
          %s2677 = scalar_lea.vmem [#allocation6], %s2676
          %2678 = dma.done %s2675, 16
        $region60: #{tpu_custom_call.1} parent=47 // pred_fallthru
          _
      $region48: #{tpu_custom_call.1} parent=5 // pred_fallthru
        _
    $region6: #{tpu_custom_call.1} parent=1 // loop_footer
      %s21 = sadd.s32 1, %s17
    $region7: #{tpu_custom_call.1} parent=1 // loop_footer_branch
      %16 = sbr.rel target = $region3
    $region8: #{tpu_custom_call.1} parent=1 // loop_exit
      _
    %2679 = vsyncpa [#allocation3], 1
    %s2680 = scalar_lea.sflag [#allocation3], 1
    %2681 = vsyncpa %s2680, 1
    %2682 = vsyncpa [#allocation5], 1
    %s2683 = scalar_lea.sflag [#allocation5], 1
    %2684 = vsyncpa %s2683, 1

</llo_original>
